<compile_context>
chip_gen: v7x
topology: tpu7x:2x2x1
jax: 0.10.0
libtpu: 0.0.40
codegen_flags: <defaults>
</compile_context>

<pallas_src>
import numpy as np
import jax
import jax.numpy as jnp
from jax.experimental import pallas as pl
from jax.experimental.pallas import tpu as pltpu

INTERESTING_IDX = np.array([
    291, 37, 40, 267, 270, 80, 17, 82, 308, 181, 405, 375, 312, 310, 87, 88,
    317, 318, 468, 469, 470, 471, 472, 473, 474, 475, 476, 477, 478, 479, 480,
    481, 482, 483, 484, 485, 486, 487, 488, 489, 490, 492, 493, 494, 498, 499,
    500, 501, 502, 503, 504, 505, 506, 507, 508, 509, 510, 511, 512, 522, 523,
    524, 525, 526, 527, 528, 529, 530, 531, 532, 533, 534, 535, 536, 537, 538,
    539, 540, 541, 542], dtype=np.int32)

H_OUT, W_OUT = 160, 80  # F.interpolate(..., size=(160, 80), mode='nearest-exact')


def _nearest_exact_indices(out_size: int, in_size: int) -> np.ndarray:
    """PyTorch 'nearest-exact' source index table: floor((i+0.5)*in/out), clamped.

    Kept in float64 host math so it matches PyTorch bit-for-bit; under jit it
    is baked into the executable as a constant (no per-call transfer)."""
    scale = in_size / out_size
    idx = np.floor((np.arange(out_size) + 0.5) * scale).astype(np.int64)
    return np.minimum(idx, in_size - 1).astype(np.int32)


def _preprocess_kernel(src_ref, x_ref, o_ref, acc_ref, cnt_ref, sum_ref, sq_ref):
    # grid = (2, nT); axis 0 = pass (0: stats, 1: normalize + gather), axis 1 = T tile.
    # src_ref: (H_OUT, 1)  int32  nearest-exact source-row table (tiny VMEM const)
    # x_ref  : (tT, Dp)    f32    current tile of the gathered landmark slab
    # o_ref  : (H_OUT, Dp) f32    output, resident across the whole grid
    # acc_ref: (H_OUT, Dp) f32    gather accumulator (VMEM scratch)
    # cnt/sum/sq_ref: (1, 1) f32  scalar partials (valid count, sum x, sum d^2)
    p = pl.program_id(0)
    t = pl.program_id(1)
    n_t = pl.num_programs(1)
    h_out = o_ref.shape[0]
    t_tile = x_ref.shape[0]

    x = x_ref[...]
    isn = jnp.isnan(x)

    @pl.when(jnp.logical_and(p == 0, t == 0))
    def _init():
        acc_ref[...] = jnp.zeros_like(acc_ref)
        cnt_ref[...] = jnp.zeros_like(cnt_ref)
        sum_ref[...] = jnp.zeros_like(sum_ref)
        sq_ref[...] = jnp.zeros_like(sq_ref)

    @pl.when(p == 0)
    def _stats():
        # NaN-aware count / sum partials (NaN-padded rows & lanes contribute 0).
        cnt_ref[...] += jnp.sum(jnp.where(isn, 0.0, 1.0), keepdims=True)
        sum_ref[...] += jnp.sum(jnp.where(isn, 0.0, x), keepdims=True)

    @pl.when(p == 1)
    def _normalize_gather():
        mu = sum_ref[...] / cnt_ref[...]                      # (1,1), exact two-pass mean
        d = jnp.where(isn, 0.0, x - mu)                       # 0 on NaN, x - mu elsewhere
        sq_ref[...] += jnp.sum(d * d, keepdims=True)
        # One-hot nearest-exact temporal selection built in-kernel (no HBM S):
        # S[i, r] = 1  iff  src[i] == t*tT + r.  Padded rows (>= T) never match.
        col = jax.lax.broadcasted_iota(jnp.int32, (h_out, t_tile), 1) + t * t_tile
        s = jnp.where(src_ref[...] == col, 1.0, 0.0)
        # Exact 0/1 row-gather matmul; precision pinned so f32 values survive intact.
        acc_ref[...] += jnp.dot(s, d,
                                preferred_element_type=jnp.float32,
                                precision=jax.lax.Precision.HIGHEST)

    @pl.when(jnp.logical_and(p == 1, t == n_t - 1))
    def _finalize():
        # torch .std() is unbiased (ddof=1); inv scale deferred to the small
        # (H_OUT, Dp) output slab instead of a full (T, Dp) pass.
        std = jnp.sqrt(sq_ref[...] / (cnt_ref[...] - 1.0))
        o_ref[...] = acc_ref[...] * (1.0 / (std + 1e-6))


@jax.jit
def preprocessing_forward(yy: jax.Array) -> jax.Array:
    """yy: (T, >=543, C) float -> (1, 160, 80, C) float32."""
    T, _, C = yy.shape

    # Landmark gather + flatten. Under jit the constant-index take fuses with
    # the pad/reshape (no separately materialised un-fused intermediate).
    idx = jnp.asarray(INTERESTING_IDX)
    x = jnp.take(yy.astype(jnp.float32), idx, axis=1)         # (T, 80, C)

    D = W_OUT * C
    Dp = ((D + 127) // 128) * 128                             # lane-dense padding
    t_tile = min(512, ((T + 7) // 8) * 8)                     # >=0.5 MB / grid step at long T
    n_t = -(-T // t_tile)                                     # cdiv
    Tp = n_t * t_tile

    x2 = x.reshape(T, D)
    if (Tp - T) or (Dp - D):
        # NaN padding: excluded from cnt/mu/std, never selected by the gather
        # (src < T), and becomes 0 in the output; sliced off below.
        x2 = jnp.pad(x2, ((0, Tp - T), (0, Dp - D)), constant_values=float("nan"))

    # Nearest-exact source-row table as a tiny (160, 1) int32 column; under jit
    # it's a compile-time constant, and it replaces the old (160, T) one-hot input.
    src = jnp.asarray(_nearest_exact_indices(H_OUT, T).reshape(H_OUT, 1))

    out2 = pl.pallas_call(
        _preprocess_kernel,
        out_shape=jax.ShapeDtypeStruct((H_OUT, Dp), jnp.float32),
        grid=(2, n_t),                                        # (pass, T-tile); reduction last
        in_specs=[
            pl.BlockSpec((H_OUT, 1), lambda p, t: (0, 0)),    # src column (replicated)
            pl.BlockSpec((t_tile, Dp), lambda p, t: (t, 0)),  # streamed x tile
        ],
        out_specs=pl.BlockSpec((H_OUT, Dp), lambda p, t: (0, 0)),  # resident accumulator target
        scratch_shapes=[
            pltpu.VMEM((H_OUT, Dp), jnp.float32),             # gather accumulator
            pltpu.VMEM((1, 1), jnp.float32),                  # cnt
            pltpu.VMEM((1, 1), jnp.float32),                  # sum x
            pltpu.VMEM((1, 1), jnp.float32),                  # sum (x - mu)^2
        ],
        compiler_params=pltpu.CompilerParams(
            dimension_semantics=("arbitrary", "arbitrary")),
    )(src, x2)

    return out2[:, :D].reshape(H_OUT, W_OUT, C)[None]         # (1, 160, 80, C)


def _reference_forward(yy_np: np.ndarray) -> np.ndarray:
    """Pure-numpy reference mirroring the PyTorch module."""
    x = yy_np[:, INTERESTING_IDX, :].astype(np.float64)
    ref = x.flatten()
    ref = ref[~np.isnan(ref)]
    mu = ref.mean()
    std = ref.std(ddof=1) + 1e-6
    xn = (x - mu) / std
    xn = np.where(np.isnan(xn), 0.0, xn)
    src_h = _nearest_exact_indices(H_OUT, x.shape[0])
    src_w = _nearest_exact_indices(W_OUT, x.shape[1])
    out = xn[src_h][:, src_w, :]
    return out[None].astype(np.float32)


if __name__ == "__main__":
    key = jax.random.PRNGKey(0)
    k1, k2 = jax.random.split(key)
    T, N_LMK, C = 8, 543, 3                      # small seq, full 543 landmarks, xyz
    yy = jax.random.normal(k1, (T, N_LMK, C), dtype=jnp.float32)
    nan_mask = jax.random.uniform(k2, (T, N_LMK, C)) < 0.05
    yy = jnp.where(nan_mask, jnp.float32(jnp.nan), yy)   # inject NaNs like real data

    out = jax.block_until_ready(preprocessing_forward(yy))

    ref = _reference_forward(np.asarray(yy))
    assert out.shape == (1, H_OUT, W_OUT, C), out.shape
    np.testing.assert_allclose(np.asarray(out), ref, rtol=1e-4, atol=1e-4)
    print("KERNEL_OK")
</pallas_src>

<mosaic_0001>
module attributes {stable_mosaic.version = 11 : i64} {
  func.func @_preprocess_kernel(%arg0: i32, %arg1: i32, %arg2: memref<160x1xi32, #tpu.memory_space<vmem>>, %arg3: memref<8x256xf32, #tpu.memory_space<vmem>>, %arg4: memref<160x256xf32, #tpu.memory_space<vmem>>, %arg5: memref<160x256xf32, #tpu.memory_space<vmem>>, %arg6: memref<1x1xf32, #tpu.memory_space<vmem>>, %arg7: memref<1x1xf32, #tpu.memory_space<vmem>>, %arg8: memref<1x1xf32, #tpu.memory_space<vmem>>) attributes {dimension_semantics = [#tpu.dimension_semantics<arbitrary>, #tpu.dimension_semantics<arbitrary>], iteration_bounds = array<i64: 2, 1>, scalar_prefetch = 0 : i64, scratch_operands = 4 : i64, tpu.core_type = #tpu.core_type<tc>, window_params = [{pipeline_mode = #tpu.pipeline_mode<synchronous>, transform_indices = @transform_0, window_bounds = array<i64: 160, 1>}, {transform_indices = @transform_1, window_bounds = array<i64: 8, 256>}, {pipeline_mode = #tpu.pipeline_mode<synchronous>, transform_indices = @transform_2, window_bounds = array<i64: 160, 256>}]} {
    %c0 = arith.constant 0 : index
    %c0_0 = arith.constant 0 : index
    %0 = vector.load %arg3[%c0, %c0_0] : memref<8x256xf32, #tpu.memory_space<vmem>>, vector<8x256xf32>
    %1 = arith.cmpf one, %0, %0 : vector<8x256xf32>
    %c0_i32 = arith.constant 0 : i32
    %2 = arith.cmpi eq, %arg0, %c0_i32 : i32
    %c0_i32_1 = arith.constant 0 : i32
    %3 = arith.cmpi eq, %arg1, %c0_i32_1 : i32
    %4 = arith.andi %2, %3 : i1
    %5 = arith.extui %4 : i1 to i32
    %c0_i32_2 = arith.constant 0 : i32
    %6 = arith.cmpi ne, %5, %c0_i32_2 : i32
    scf.if %6 {
      %cst = arith.constant 0.000000e+00 : f32
      %18 = vector.broadcast %cst : f32 to vector<160x256xf32>
      %c0_9 = arith.constant 0 : index
      %c0_10 = arith.constant 0 : index
      %19 = vector.load %arg5[%c0_9, %c0_10] : memref<160x256xf32, #tpu.memory_space<vmem>>, vector<160x256xf32>
      tpu.vector_store %arg5[%c0_9, %c0_10], %18 {strides = array<i32>} : memref<160x256xf32, #tpu.memory_space<vmem>>, vector<160x256xf32>,
      %cst_11 = arith.constant 0.000000e+00 : f32
      %20 = vector.broadcast %cst_11 : f32 to vector<1x1xf32>
      %c0_12 = arith.constant 0 : index
      %c0_13 = arith.constant 0 : index
      %21 = vector.load %arg6[%c0_12, %c0_13] : memref<1x1xf32, #tpu.memory_space<vmem>>, vector<1x1xf32>
      tpu.vector_store %arg6[%c0_12, %c0_13], %20 {strides = array<i32>} : memref<1x1xf32, #tpu.memory_space<vmem>>, vector<1x1xf32>,
      %cst_14 = arith.constant 0.000000e+00 : f32
      %22 = vector.broadcast %cst_14 : f32 to vector<1x1xf32>
      %c0_15 = arith.constant 0 : index
      %c0_16 = arith.constant 0 : index
      %23 = vector.load %arg7[%c0_15, %c0_16] : memref<1x1xf32, #tpu.memory_space<vmem>>, vector<1x1xf32>
      tpu.vector_store %arg7[%c0_15, %c0_16], %22 {strides = array<i32>} : memref<1x1xf32, #tpu.memory_space<vmem>>, vector<1x1xf32>,
      %cst_17 = arith.constant 0.000000e+00 : f32
      %24 = vector.broadcast %cst_17 : f32 to vector<1x1xf32>
      %c0_18 = arith.constant 0 : index
      %c0_19 = arith.constant 0 : index
      %25 = vector.load %arg8[%c0_18, %c0_19] : memref<1x1xf32, #tpu.memory_space<vmem>>, vector<1x1xf32>
      tpu.vector_store %arg8[%c0_18, %c0_19], %24 {strides = array<i32>} : memref<1x1xf32, #tpu.memory_space<vmem>>, vector<1x1xf32>,
    } else {
    }
    %c0_i32_3 = arith.constant 0 : i32
    %7 = arith.cmpi eq, %arg0, %c0_i32_3 : i32
    %8 = arith.extui %7 : i1 to i32
    %c0_i32_4 = arith.constant 0 : i32
    %9 = arith.cmpi ne, %8, %c0_i32_4 : i32
    scf.if %9 {
      %c0_9 = arith.constant 0 : index
      %c0_10 = arith.constant 0 : index
      %18 = vector.load %arg6[%c0_9, %c0_10] : memref<1x1xf32, #tpu.memory_space<vmem>>, vector<1x1xf32>
      %cst = arith.constant 0.000000e+00 : f32
      %cst_11 = arith.constant 1.000000e+00 : f32
      %19 = vector.broadcast %cst : f32 to vector<8x256xf32>
      %20 = vector.broadcast %cst_11 : f32 to vector<8x256xf32>
      %21 = arith.select %1, %19, %20 : vector<8x256xi1>, vector<8x256xf32>
      %22 = vector.shape_cast %21 : vector<8x256xf32> to vector<1x8x256xf32>
      %cst_12 = arith.constant dense<0.000000e+00> : vector<1xf32>
      %23 = vector.multi_reduction <add>, %22, %cst_12 [1, 2] : vector<1x8x256xf32> to vector<1xf32>
      %24 = vector.shape_cast %23 : vector<1xf32> to vector<1x1x1xf32>
      %25 = vector.extract %24[0, 0, 0] : f32 from vector<1x1x1xf32>
      %26 = vector.broadcast %25 : f32 to vector<1x1xf32>
      %27 = arith.addf %18, %26 : vector<1x1xf32>
      %c0_13 = arith.constant 0 : index
      %c0_14 = arith.constant 0 : index
      %28 = vector.load %arg6[%c0_13, %c0_14] : memref<1x1xf32, #tpu.memory_space<vmem>>, vector<1x1xf32>
      tpu.vector_store %arg6[%c0_13, %c0_14], %27 {strides = array<i32>} : memref<1x1xf32, #tpu.memory_space<vmem>>, vector<1x1xf32>,
      %c0_15 = arith.constant 0 : index
      %c0_16 = arith.constant 0 : index
      %29 = vector.load %arg7[%c0_15, %c0_16] : memref<1x1xf32, #tpu.memory_space<vmem>>, vector<1x1xf32>
      %cst_17 = arith.constant 0.000000e+00 : f32
      %30 = vector.broadcast %cst_17 : f32 to vector<8x256xf32>
      %31 = arith.select %1, %30, %0 : vector<8x256xi1>, vector<8x256xf32>
      %32 = vector.shape_cast %31 : vector<8x256xf32> to vector<1x8x256xf32>
      %cst_18 = arith.constant dense<0.000000e+00> : vector<1xf32>
      %33 = vector.multi_reduction <add>, %32, %cst_18 [1, 2] : vector<1x8x256xf32> to vector<1xf32>
      %34 = vector.shape_cast %33 : vector<1xf32> to vector<1x1x1xf32>
      %35 = vector.extract %34[0, 0, 0] : f32 from vector<1x1x1xf32>
      %36 = vector.broadcast %35 : f32 to vector<1x1xf32>
      %37 = arith.addf %29, %36 : vector<1x1xf32>
      %c0_19 = arith.constant 0 : index
      %c0_20 = arith.constant 0 : index
      %38 = vector.load %arg7[%c0_19, %c0_20] : memref<1x1xf32, #tpu.memory_space<vmem>>, vector<1x1xf32>
      tpu.vector_store %arg7[%c0_19, %c0_20], %37 {strides = array<i32>} : memref<1x1xf32, #tpu.memory_space<vmem>>, vector<1x1xf32>,
    } else {
    }
    %c1_i32 = arith.constant 1 : i32
    %10 = arith.cmpi eq, %arg0, %c1_i32 : i32
    %11 = arith.extui %10 : i1 to i32
    %c0_i32_5 = arith.constant 0 : i32
    %12 = arith.cmpi ne, %11, %c0_i32_5 : i32
    scf.if %12 {
      %c0_9 = arith.constant 0 : index
      %c0_10 = arith.constant 0 : index
      %18 = vector.load %arg7[%c0_9, %c0_10] : memref<1x1xf32, #tpu.memory_space<vmem>>, vector<1x1xf32>
      %c0_11 = arith.constant 0 : index
      %c0_12 = arith.constant 0 : index
      %19 = vector.load %arg6[%c0_11, %c0_12] : memref<1x1xf32, #tpu.memory_space<vmem>>, vector<1x1xf32>
      %20 = arith.divf %18, %19 : vector<1x1xf32>
      %21 = vector.broadcast %20 : vector<1x1xf32> to vector<8x256xf32>
      %22 = arith.subf %0, %21 : vector<8x256xf32>
      %cst = arith.constant 0.000000e+00 : f32
      %23 = vector.broadcast %cst : f32 to vector<8x256xf32>
      %24 = arith.select %1, %23, %22 : vector<8x256xi1>, vector<8x256xf32>
      %c0_13 = arith.constant 0 : index
      %c0_14 = arith.constant 0 : index
      %25 = vector.load %arg8[%c0_13, %c0_14] : memref<1x1xf32, #tpu.memory_space<vmem>>, vector<1x1xf32>
      %26 = arith.mulf %24, %24 : vector<8x256xf32>
      %27 = vector.shape_cast %26 : vector<8x256xf32> to vector<1x8x256xf32>
      %cst_15 = arith.constant dense<0.000000e+00> : vector<1xf32>
      %28 = vector.multi_reduction <add>, %27, %cst_15 [1, 2] : vector<1x8x256xf32> to vector<1xf32>
      %29 = vector.shape_cast %28 : vector<1xf32> to vector<1x1x1xf32>
      %30 = vector.extract %29[0, 0, 0] : f32 from vector<1x1x1xf32>
      %31 = vector.broadcast %30 : f32 to vector<1x1xf32>
      %32 = arith.addf %25, %31 : vector<1x1xf32>
      %c0_16 = arith.constant 0 : index
      %c0_17 = arith.constant 0 : index
      %33 = vector.load %arg8[%c0_16, %c0_17] : memref<1x1xf32, #tpu.memory_space<vmem>>, vector<1x1xf32>
      tpu.vector_store %arg8[%c0_16, %c0_17], %32 {strides = array<i32>} : memref<1x1xf32, #tpu.memory_space<vmem>>, vector<1x1xf32>,
      %34 = tpu.iota {dimensions = array<i32: 1>} : vector<160x8xi32>
      %c8_i32 = arith.constant 8 : i32
      %35 = arith.muli %arg1, %c8_i32 : i32
      %36 = vector.broadcast %35 : i32 to vector<160x8xi32>
      %37 = arith.addi %34, %36 : vector<160x8xi32>
      %c0_18 = arith.constant 0 : index
      %c0_19 = arith.constant 0 : index
      %38 = vector.load %arg2[%c0_18, %c0_19] : memref<160x1xi32, #tpu.memory_space<vmem>>, vector<160x1xi32>
      %39 = vector.broadcast %38 : vector<160x1xi32> to vector<160x8xi32>
      %40 = arith.cmpi eq, %39, %37 : vector<160x8xi32>
      %cst_20 = arith.constant 1.000000e+00 : f32
      %cst_21 = arith.constant 0.000000e+00 : f32
      %41 = vector.broadcast %cst_20 : f32 to vector<160x8xf32>
      %42 = vector.broadcast %cst_21 : f32 to vector<160x8xf32>
      %43 = arith.select %40, %41, %42 : vector<160x8xi1>, vector<160x8xf32>
      %c0_22 = arith.constant 0 : index
      %c0_23 = arith.constant 0 : index
      %44 = vector.load %arg5[%c0_22, %c0_23] : memref<160x256xf32, #tpu.memory_space<vmem>>, vector<160x256xf32>
      %cst_24 = arith.constant dense<0.000000e+00> : vector<160x256xf32>
      %45 = tpu.matmul %43, %24, %cst_24 {dimension_numbers = #tpu.dot_dimension_numbers<[1], [0], [0], [1], [0, 0, 1, 1], [], []>, precision = #tpu.contract_precision<fp32>} : vector<160x8xf32>, vector<8x256xf32>, vector<160x256xf32> -> vector<160x256xf32>
      %46 = arith.addf %44, %45 : vector<160x256xf32>
      %c0_25 = arith.constant 0 : index
      %c0_26 = arith.constant 0 : index
      %47 = vector.load %arg5[%c0_25, %c0_26] : memref<160x256xf32, #tpu.memory_space<vmem>>, vector<160x256xf32>
      tpu.vector_store %arg5[%c0_25, %c0_26], %46 {strides = array<i32>} : memref<160x256xf32, #tpu.memory_space<vmem>>, vector<160x256xf32>,
    } else {
    }
    %c1_i32_6 = arith.constant 1 : i32
    %13 = arith.cmpi eq, %arg0, %c1_i32_6 : i32
    %c0_i32_7 = arith.constant 0 : i32
    %14 = arith.cmpi eq, %arg1, %c0_i32_7 : i32
    %15 = arith.andi %13, %14 : i1
    %16 = arith.extui %15 : i1 to i32
    %c0_i32_8 = arith.constant 0 : i32
    %17 = arith.cmpi ne, %16, %c0_i32_8 : i32
    scf.if %17 {
      %c0_9 = arith.constant 0 : index
      %c0_10 = arith.constant 0 : index
      %18 = vector.load %arg8[%c0_9, %c0_10] : memref<1x1xf32, #tpu.memory_space<vmem>>, vector<1x1xf32>
      %c0_11 = arith.constant 0 : index
      %c0_12 = arith.constant 0 : index
      %19 = vector.load %arg6[%c0_11, %c0_12] : memref<1x1xf32, #tpu.memory_space<vmem>>, vector<1x1xf32>
      %cst = arith.constant 1.000000e+00 : f32
      %20 = vector.broadcast %cst : f32 to vector<1x1xf32>
      %21 = arith.subf %19, %20 : vector<1x1xf32>
      %22 = arith.divf %18, %21 : vector<1x1xf32>
      %23 = math.sqrt %22 : vector<1x1xf32>
      %c0_13 = arith.constant 0 : index
      %c0_14 = arith.constant 0 : index
      %24 = vector.load %arg5[%c0_13, %c0_14] : memref<160x256xf32, #tpu.memory_space<vmem>>, vector<160x256xf32>
      %cst_15 = arith.constant 9.99999997E-7 : f32
      %25 = vector.broadcast %cst_15 : f32 to vector<1x1xf32>
      %26 = arith.addf %23, %25 : vector<1x1xf32>
      %cst_16 = arith.constant 1.000000e+00 : f32
      %27 = vector.broadcast %cst_16 : f32 to vector<1x1xf32>
      %28 = arith.divf %27, %26 : vector<1x1xf32>
      %29 = vector.broadcast %28 : vector<1x1xf32> to vector<160x256xf32>
      %30 = arith.mulf %24, %29 : vector<160x256xf32>
      %c0_17 = arith.constant 0 : index
      %c0_18 = arith.constant 0 : index
      %31 = vector.load %arg4[%c0_17, %c0_18] : memref<160x256xf32, #tpu.memory_space<vmem>>, vector<160x256xf32>
      tpu.vector_store %arg4[%c0_17, %c0_18], %30 {strides = array<i32>} : memref<160x256xf32, #tpu.memory_space<vmem>>, vector<160x256xf32>,
    } else {
    }
    return
  }
  func.func @transform_0(%arg0: i32, %arg1: i32) -> (i32, i32) {
    %c0_i32 = arith.constant 0 : i32
    %c0_i32_0 = arith.constant 0 : i32
    %c0_i32_1 = arith.constant 0 : i32
    return %c0_i32, %c0_i32_0 : i32, i32
  }
  func.func @transform_1(%arg0: i32, %arg1: i32) -> (i32, i32) {
    %c0_i32 = arith.constant 0 : i32
    %c0_i32_0 = arith.constant 0 : i32
    return %arg1, %c0_i32 : i32, i32
  }
  func.func @transform_2(%arg0: i32, %arg1: i32) -> (i32, i32) {
    %c0_i32 = arith.constant 0 : i32
    %c0_i32_0 = arith.constant 0 : i32
    %c0_i32_1 = arith.constant 0 : i32
    return %c0_i32, %c0_i32_0 : i32, i32
  }
}

</mosaic_0001>

<llo_original>
// kernel: preprocessing_forward.1
$region0: #{preprocessing_forward.1}
  #allocation0 [shape = 'u32[]', space=smem, size = 0x4, offset = 0x4, fixed_abs, tag = 'smem constant byte address 0x4 - core index']
  #allocation1 [shape = 'u32[144,128]{1,0:T(1,128)}', space=vmem, size = 0x12000, scoped, tag = 'internal scratch']
  #allocation2 [shape = 'f32[160,256]{1,0:T(8,128)}', space=vmem, size = 0x28000, scoped, tag = 'scratch operand']
  #allocation3 [shape = 'f32[1,1]{1,0:T(1,128)}', space=vmem, size = 0x200, scoped, tag = 'scratch operand']
  #allocation4 [shape = 'f32[1,1]{1,0:T(1,128)}', space=vmem, size = 0x200, scoped, tag = 'scratch operand']
  #allocation5 [shape = 'f32[1,1]{1,0:T(1,128)}', space=vmem, size = 0x200, scoped, tag = 'scratch operand']
  %s0 = inlined_call_operand.vmem [shape: s32[160,1], index: 0, kind: input, shape index: {}]
  %s1 = inlined_call_operand.vmem [shape: f32[8,256], index: 1, kind: input, shape index: {}]
  %s2 = inlined_call_operand.vmem [shape: f32[160,256], index: 2, kind: output, shape index: {}]
  %s3 = sld [smem:[#allocation0]]
  $region57: #{preprocessing_forward.1} parent=0
    _
  %s5 = ssub.s32 1, %s3
  %s6 = scalar_select 0, %s5, %s3
  loop: start=0, step=1, limit=4
  $region2: #{preprocessing_forward.1} parent=0 // loop_pre_header
    _
  $region3: #{preprocessing_forward.1} parent=0 // loop_header
    %s8 = sphi 0, %s12
    %p9 = scmp.ge.s32.totalorder %s8, 4
    %s15 = sphi 0, %s27
    %s16 = sphi 0, %s23
    %s17 = sphi 0, %s15
    %s18 = sphi 0, %s16
    %s19 = sphi 0, %s17
    %s20 = sphi 0, %s18
    %s28 = sphi 0, %s28
    %s30 = sphi 0, %s28
    %s31 = sphi 0, %s30
    %s45 = sphi 0, %s31
    %s51 = sphi 0, %s53
    %s54 = sphi 0, %s51
    %s55 = sphi 0, %s54
    %s71 = sphi 0, %s55
    %s75 = sphi 0, %s75
    %s77 = sphi 0, %s75
    %s78 = sphi 0, %s77
    %s92 = sphi 0, %s78
  $region4: #{preprocessing_forward.1} parent=0 // loop_header_branch
    %11 = sbr.rel (%p9) target = $region8
  $region5: #{preprocessing_forward.1} parent=0 // loop_body
    %s13 = ssub.s32 %s8, 1
    %s14 = ssub.s32 %s8, 2
    %s21 = sadd.s32 1, %s16
    %p22 = scmp.ge.s32.totalorder %s21, 1
    %s23 = scalar_select %p22, 0, %s21
    %s24 = sadd.s32 1, %s15
    %s25 = scalar_select %p22, %s24, %s15
    %p26 = scmp.ge.s32.totalorder %s25, 2
    %s27 = scalar_select %p26, 0, %s25
    %s29 = sadd.s32 %s28, 1
    %p32 = scmp.eq.s32.totalorder %s8, 1
    %p33 = scmp.ne.s32.totalorder %s28, %s30
    %p34 = scmp.eq.s32.totalorder %s8, 0
    %p35 = por %p33, %p34
    %p36 = scmp.ne.s32.totalorder %s28, %s30
    %p37 = scmp.eq.s32.totalorder %s13, 1
    %p38 = por %p36, %p37
    %p39 = scmp.ne.s32.totalorder %s30, %s31
    %p40 = scmp.eq.s32.totalorder %s13, 0
    %p41 = por %p39, %p40
    %p42 = scmp.ne.s32.totalorder %s30, %s31
    %p43 = scmp.eq.s32.totalorder %s14, 1
    %p44 = por %p42, %p43
    %p46 = scmp.ne.s32.totalorder %s31, %s45
    %p47 = scmp.eq.s32.totalorder %s14, 0
    %p48 = por %p46, %p47
    %s49 = ssub.s32 %s16, %s23
    %p50 = scmp.eq.s32.totalorder %s49, 0
    %s52 = sadd.s32 %s51, 1
    %s53 = scalar_select %p50, %s51, %s52
    %p56 = pneg %p50
    %p57 = scmp.eq.s32.totalorder %s8, 1
    %p58 = por %p56, %p57
    %p59 = scmp.ne.s32.totalorder %s51, %s54
    %p60 = scmp.eq.s32.totalorder %s8, 0
    %p61 = por %p59, %p60
    %p62 = scmp.ne.s32.totalorder %s51, %s54
    %p63 = scmp.eq.s32.totalorder %s13, 1
    %p64 = por %p62, %p63
    %p65 = scmp.ne.s32.totalorder %s54, %s55
    %p66 = scmp.eq.s32.totalorder %s13, 0
    %p67 = por %p65, %p66
    %p68 = scmp.ne.s32.totalorder %s54, %s55
    %p69 = scmp.eq.s32.totalorder %s14, 1
    %p70 = por %p68, %p69
    %p72 = scmp.ne.s32.totalorder %s55, %s71
    %p73 = scmp.eq.s32.totalorder %s14, 0
    %p74 = por %p72, %p73
    %s76 = sadd.s32 %s75, 1
    %p79 = scmp.eq.s32.totalorder %s8, 1
    %p80 = scmp.ne.s32.totalorder %s75, %s77
    %p81 = scmp.eq.s32.totalorder %s8, 0
    %p82 = por %p80, %p81
    %p83 = scmp.ne.s32.totalorder %s75, %s77
    %p84 = scmp.eq.s32.totalorder %s13, 1
    %p85 = por %p83, %p84
    %p86 = scmp.ne.s32.totalorder %s77, %s78
    %p87 = scmp.eq.s32.totalorder %s13, 0
    %p88 = por %p86, %p87
    %p89 = scmp.ne.s32.totalorder %s77, %s78
    %p90 = scmp.eq.s32.totalorder %s14, 1
    %p91 = por %p89, %p90
    %p93 = scmp.ne.s32.totalorder %s78, %s92
    %p94 = scmp.eq.s32.totalorder %s14, 0
    %p95 = por %p93, %p94
    %p96 = scmp.le.s32.totalorder 1, %s8
    %p97 = scmp.lt.s32.totalorder %s8, 3
    %p98 = pnand %p96, %p97
    %p99 = pneg %p98
    // Predicated region
    $region9: #{preprocessing_forward.1} parent=5 // pred_check
      _
    $region10: #{preprocessing_forward.1} parent=5 // pred_check_branch
      %101 = sbr.rel (%p98) target = $region12
    $region11: #{preprocessing_forward.1} parent=5 // pred_region
      %s102 = ssub.s32 %s8, 1
      // Predicated region
      $region13: #{preprocessing_forward.1} parent=11 // pred_check
        %p103 = pneg %p41
      $region14: #{preprocessing_forward.1} parent=11 // pred_check_branch
        %105 = sbr.rel (%p103) target = $region16
      $region15: #{preprocessing_forward.1} parent=11 // pred_region
        _
      $region16: #{preprocessing_forward.1} parent=11 // pred_fallthru
        _
      // Predicated region
      $region17: #{preprocessing_forward.1} parent=11 // pred_check
        %p106 = pneg %p67
      $region18: #{preprocessing_forward.1} parent=11 // pred_check_branch
        %108 = sbr.rel (%p106) target = $region20
      $region19: #{preprocessing_forward.1} parent=11 // pred_region
        %p109 = scmp.lt.s32.totalorder %s18, 0
        %s110 = scalar_select %p109, %s18, 0
        %s111 = smul.addr %s110, 2
        %s112 = smul.addr %s111, 8
        %s113 = scalar_lea.vmem %s1, %s112
      $region20: #{preprocessing_forward.1} parent=11 // pred_fallthru
        _
    $region12: #{preprocessing_forward.1} parent=5 // pred_fallthru
      _
    %p114 = scmp.lt.s32.totalorder %s8, 2
    // Predicated region
    $region21: #{preprocessing_forward.1} parent=5 // pred_check
      %p115 = pneg %p114
    $region22: #{preprocessing_forward.1} parent=5 // pred_check_branch
      %117 = sbr.rel (%p115) target = $region24
    $region23: #{preprocessing_forward.1} parent=5 // pred_region
      _
    $region24: #{preprocessing_forward.1} parent=5 // pred_fallthru
      _
    %p118 = scmp.le.s32.totalorder 1, %s8
    %p119 = scmp.lt.s32.totalorder %s8, 3
    %p120 = pnand %p118, %p119
    %p121 = pneg %p120
    // Predicated region
    $region25: #{preprocessing_forward.1} parent=5 // pred_check
      _
    $region26: #{preprocessing_forward.1} parent=5 // pred_check_branch
      %123 = sbr.rel (%p120) target = $region28
    $region27: #{preprocessing_forward.1} parent=5 // pred_region
      %s124 = ssub.s32 %s8, 1
      %p125 = pneg %p41
      %p126 = pneg %p38
      %p127 = scmp.lt.s32.totalorder %s18, 0
      %s128 = scalar_select %p127, %s18, 0
      %s129 = smul.addr %s128, 2
      %s130 = smul.addr %s129, 8
      %s131 = scalar_lea.vmem %s1, %s130
      %p132 = pneg %p67
      %p133 = pneg %p64
      %p134 = pneg %p88
      %p135 = pneg %p85
      %p136 = scmp.lt.s32.totalorder %s18, 0
      %s137 = scalar_select %p136, %s18, 0
      %s138 = smul.addr %s137, 2
      %s139 = smul.addr %s138, 8
      %s140 = scalar_lea.vmem %s1, %s139
      %v141 = vld [vmem:[%s140] sm:$0xff]
      %v142 = vld [vmem:[%s140 + $0x8] sm:$0xff]
      %vm143 = vcmp.ne.f32.partialorder %v141, %v141
      %vm144 = vcmp.ne.f32.partialorder %v142, %v142
      %p145 = scmp.eq.s32.totalorder %s17, 0
      %p146 = scmp.eq.s32.totalorder %s18, 0
      %p147 = pnand %p145, %p146
      %p148 = pneg %p147
      // Predicated region
      $region29: #{preprocessing_forward.1} parent=27 // pred_check
        _
      $region30: #{preprocessing_forward.1} parent=27 // pred_check_branch
        %150 = sbr.rel (%p147) target = $region32
      $region31: #{preprocessing_forward.1} parent=27 // pred_region
        %151 = vst [vmem:[#allocation2] sm:$0xff] 0.0
        %152 = vst [vmem:[#allocation2 + $0x8] sm:$0xff] 0.0
        %153 = vst [vmem:[#allocation2 + $0x10] sm:$0xff] 0.0
        %154 = vst [vmem:[#allocation2 + $0x18] sm:$0xff] 0.0
        %155 = vst [vmem:[#allocation2 + $0x20] sm:$0xff] 0.0
        %156 = vst [vmem:[#allocation2 + $0x28] sm:$0xff] 0.0
        %157 = vst [vmem:[#allocation2 + $0x30] sm:$0xff] 0.0
        %158 = vst [vmem:[#allocation2 + $0x38] sm:$0xff] 0.0
        %159 = vst [vmem:[#allocation2 + $0x40] sm:$0xff] 0.0
        %160 = vst [vmem:[#allocation2 + $0x48] sm:$0xff] 0.0
        %161 = vst [vmem:[#allocation2 + $0x50] sm:$0xff] 0.0
        %162 = vst [vmem:[#allocation2 + $0x58] sm:$0xff] 0.0
        %163 = vst [vmem:[#allocation2 + $0x60] sm:$0xff] 0.0
        %164 = vst [vmem:[#allocation2 + $0x68] sm:$0xff] 0.0
        %165 = vst [vmem:[#allocation2 + $0x70] sm:$0xff] 0.0
        %166 = vst [vmem:[#allocation2 + $0x78] sm:$0xff] 0.0
        %167 = vst [vmem:[#allocation2 + $0x80] sm:$0xff] 0.0
        %168 = vst [vmem:[#allocation2 + $0x88] sm:$0xff] 0.0
        %169 = vst [vmem:[#allocation2 + $0x90] sm:$0xff] 0.0
        %170 = vst [vmem:[#allocation2 + $0x98] sm:$0xff] 0.0
        %171 = vst [vmem:[#allocation2 + $0xa0] sm:$0xff] 0.0
        %172 = vst [vmem:[#allocation2 + $0xa8] sm:$0xff] 0.0
        %173 = vst [vmem:[#allocation2 + $0xb0] sm:$0xff] 0.0
        %174 = vst [vmem:[#allocation2 + $0xb8] sm:$0xff] 0.0
        %175 = vst [vmem:[#allocation2 + $0xc0] sm:$0xff] 0.0
        %176 = vst [vmem:[#allocation2 + $0xc8] sm:$0xff] 0.0
        %177 = vst [vmem:[#allocation2 + $0xd0] sm:$0xff] 0.0
        %178 = vst [vmem:[#allocation2 + $0xd8] sm:$0xff] 0.0
        %179 = vst [vmem:[#allocation2 + $0xe0] sm:$0xff] 0.0
        %180 = vst [vmem:[#allocation2 + $0xe8] sm:$0xff] 0.0
        %181 = vst [vmem:[#allocation2 + $0xf0] sm:$0xff] 0.0
        %182 = vst [vmem:[#allocation2 + $0xf8] sm:$0xff] 0.0
        %183 = vst [vmem:[#allocation2 + $0x100] sm:$0xff] 0.0
        %184 = vst [vmem:[#allocation2 + $0x108] sm:$0xff] 0.0
        %185 = vst [vmem:[#allocation2 + $0x110] sm:$0xff] 0.0
        %186 = vst [vmem:[#allocation2 + $0x118] sm:$0xff] 0.0
        %187 = vst [vmem:[#allocation2 + $0x120] sm:$0xff] 0.0
        %188 = vst [vmem:[#allocation2 + $0x128] sm:$0xff] 0.0
        %189 = vst [vmem:[#allocation2 + $0x130] sm:$0xff] 0.0
        %190 = vst [vmem:[#allocation2 + $0x138] sm:$0xff] 0.0
        %vm191 = vcmask 0
        %192 = vst.msk [vmem:[#allocation3] sm:$0x1] %vm191, 0.0
        %193 = vst.msk [vmem:[#allocation4] sm:$0x1] %vm191, 0.0
        %194 = vst.msk [vmem:[#allocation5] sm:$0x1] %vm191, 0.0
      $region32: #{preprocessing_forward.1} parent=27 // pred_fallthru
        _
      // Predicated region
      $region33: #{preprocessing_forward.1} parent=27 // pred_check
        %p195 = pneg %p145
      $region34: #{preprocessing_forward.1} parent=27 // pred_check_branch
        %197 = sbr.rel (%p195) target = $region36
      $region35: #{preprocessing_forward.1} parent=27 // pred_region
        %v198 = vld [vmem:[#allocation3] sm:$0x1]
        %v199 = vsel %vm143, 0.0, 1.0
        %v200 = vsel %vm144, 0.0, 1.0
        %v201 = vadd.f32 %v199, %v200
        %202 = vadd.xlane.f32.xlu0 %v201
        %v203 = vpop.xlane.xlu0 %202
        %v204 = vrot.slane %v203, 4
        %v205 = vadd.f32 %v203, %v204
        %v206 = vrot.slane %v205, 2
        %v207 = vadd.f32 %v205, %v206
        %v208 = vrot.slane %v207, 1
        %v209 = vadd.f32 %v207, %v208
        %s210 = vtos %v209
        %v211 = vstv %s210
        %v212 = vadd.f32 %v198, %v211
        %vm213 = vcmask 0
        %214 = vst.msk [vmem:[#allocation3] sm:$0x1] %vm213, %v212
        %v215 = vld [vmem:[#allocation4] sm:$0x1]
        %v216 = vsel %vm143, 0.0, %v141
        %v217 = vsel %vm144, 0.0, %v142
        %v218 = vadd.f32 %v216, %v217
        %219 = vadd.xlane.f32.xlu0 %v218
        %v220 = vpop.xlane.xlu0 %219
        %v221 = vrot.slane %v220, 4
        %v222 = vadd.f32 %v220, %v221
        %v223 = vrot.slane %v222, 2
        %v224 = vadd.f32 %v222, %v223
        %v225 = vrot.slane %v224, 1
        %v226 = vadd.f32 %v224, %v225
        %s227 = vtos %v226
        %v228 = vstv %s227
        %v229 = vadd.f32 %v215, %v228
        %230 = vst.msk [vmem:[#allocation4] sm:$0x1] %vm213, %v229
      $region36: #{preprocessing_forward.1} parent=27 // pred_fallthru
        _
      %p231 = scmp.eq.s32.totalorder %s17, 1
      // Predicated region
      $region37: #{preprocessing_forward.1} parent=27 // pred_check
        %p232 = pneg %p231
      $region38: #{preprocessing_forward.1} parent=27 // pred_check_branch
        %234 = sbr.rel (%p232) target = $region40
      $region39: #{preprocessing_forward.1} parent=27 // pred_region
        %v235 = vld [vmem:[#allocation4] sm:$0x1]
        %v236 = vld [vmem:[#allocation3] sm:$0x1]
        %v237 = vrcp.pop %v236
        %v238 = vmul.f32 %v235, %v237
        %v240 = vlaneseq
        %v241 = vshrl.u32 %v240, 7
        %v242 = vsub.s32 0, %v241
        %v243 = vrot.slane %v238, %v242
        %244 = vset.pattern.permute.xlu0 0
        %245 = vperm.xlu0 %244, %v243
        %v246 = vpop.permute.xlu0 %245
        %v248 = vsub.f32 %v141, %v246
        %v249 = vsub.f32 %v142, %v246
        %v250 = vsel %vm143, 0.0, %v248
        %v251 = vsel %vm144, 0.0, %v249
        %v252 = vld [vmem:[#allocation5] sm:$0x1]
        %v253 = vmul.f32 %v250, %v250
        %v254 = vmul.f32 %v251, %v251
        %v255 = vadd.f32 %v253, %v254
        %256 = vadd.xlane.f32.xlu0 %v255
        %v257 = vpop.xlane.xlu0 %256
        %v258 = vrot.slane %v257, 4
        %v259 = vadd.f32 %v257, %v258
        %v260 = vrot.slane %v259, 2
        %v261 = vadd.f32 %v259, %v260
        %v262 = vrot.slane %v261, 1
        %v263 = vadd.f32 %v261, %v262
        %s264 = vtos %v263
        %v265 = vstv %s264
        %v266 = vadd.f32 %v252, %v265
        %vm267 = vcmask 0
        %268 = vst.msk [vmem:[#allocation5] sm:$0x1] %vm267, %v266
        %v269 = vlaneseq
        %v270 = vand.u32 %v269, 127
        %s271 = smul.u32 %s18, 8
        %v272 = vstv %s271
        %v273 = vadd.s32 %v270, %v272
        %v274 = vld [vmem:[%s0] sm:$0xff]
        %v275 = vld [vmem:[%s0 + $0x8] sm:$0xff]
        %v276 = vld [vmem:[%s0 + $0x10] sm:$0xff]
        %v277 = vld [vmem:[%s0 + $0x18] sm:$0xff]
        %v278 = vld [vmem:[%s0 + $0x20] sm:$0xff]
        %v279 = vld [vmem:[%s0 + $0x28] sm:$0xff]
        %v280 = vld [vmem:[%s0 + $0x30] sm:$0xff]
        %v281 = vld [vmem:[%s0 + $0x38] sm:$0xff]
        %v282 = vld [vmem:[%s0 + $0x40] sm:$0xff]
        %v283 = vld [vmem:[%s0 + $0x48] sm:$0xff]
        %v284 = vld [vmem:[%s0 + $0x50] sm:$0xff]
        %v285 = vld [vmem:[%s0 + $0x58] sm:$0xff]
        %v286 = vld [vmem:[%s0 + $0x60] sm:$0xff]
        %v287 = vld [vmem:[%s0 + $0x68] sm:$0xff]
        %v288 = vld [vmem:[%s0 + $0x70] sm:$0xff]
        %v289 = vld [vmem:[%s0 + $0x78] sm:$0xff]
        %v290 = vld [vmem:[%s0 + $0x80] sm:$0xff]
        %v291 = vld [vmem:[%s0 + $0x88] sm:$0xff]
        %v292 = vld [vmem:[%s0 + $0x90] sm:$0xff]
        %v293 = vld [vmem:[%s0 + $0x98] sm:$0xff]
        %294 = vset.pattern.permute.xlu0 0
        %295 = vperm.xlu0 %294, %v274
        %v296 = vpop.permute.xlu0 %295
        %297 = vset.pattern.permute.xlu0 0
        %298 = vperm.xlu0 %297, %v275
        %v299 = vpop.permute.xlu0 %298
        %300 = vset.pattern.permute.xlu0 0
        %301 = vperm.xlu0 %300, %v276
        %v302 = vpop.permute.xlu0 %301
        %303 = vset.pattern.permute.xlu0 0
        %304 = vperm.xlu0 %303, %v277
        %v305 = vpop.permute.xlu0 %304
        %306 = vset.pattern.permute.xlu0 0
        %307 = vperm.xlu0 %306, %v278
        %v308 = vpop.permute.xlu0 %307
        %309 = vset.pattern.permute.xlu0 0
        %310 = vperm.xlu0 %309, %v279
        %v311 = vpop.permute.xlu0 %310
        %312 = vset.pattern.permute.xlu0 0
        %313 = vperm.xlu0 %312, %v280
        %v314 = vpop.permute.xlu0 %313
        %315 = vset.pattern.permute.xlu0 0
        %316 = vperm.xlu0 %315, %v281
        %v317 = vpop.permute.xlu0 %316
        %318 = vset.pattern.permute.xlu0 0
        %319 = vperm.xlu0 %318, %v282
        %v320 = vpop.permute.xlu0 %319
        %321 = vset.pattern.permute.xlu0 0
        %322 = vperm.xlu0 %321, %v283
        %v323 = vpop.permute.xlu0 %322
        %324 = vset.pattern.permute.xlu0 0
        %325 = vperm.xlu0 %324, %v284
        %v326 = vpop.permute.xlu0 %325
        %327 = vset.pattern.permute.xlu0 0
        %328 = vperm.xlu0 %327, %v285
        %v329 = vpop.permute.xlu0 %328
        %330 = vset.pattern.permute.xlu0 0
        %331 = vperm.xlu0 %330, %v286
        %v332 = vpop.permute.xlu0 %331
        %333 = vset.pattern.permute.xlu0 0
        %334 = vperm.xlu0 %333, %v287
        %v335 = vpop.permute.xlu0 %334
        %336 = vset.pattern.permute.xlu0 0
        %337 = vperm.xlu0 %336, %v288
        %v338 = vpop.permute.xlu0 %337
        %339 = vset.pattern.permute.xlu0 0
        %340 = vperm.xlu0 %339, %v289
        %v341 = vpop.permute.xlu0 %340
        %342 = vset.pattern.permute.xlu0 0
        %343 = vperm.xlu0 %342, %v290
        %v344 = vpop.permute.xlu0 %343
        %345 = vset.pattern.permute.xlu0 0
        %346 = vperm.xlu0 %345, %v291
        %v347 = vpop.permute.xlu0 %346
        %348 = vset.pattern.permute.xlu0 0
        %349 = vperm.xlu0 %348, %v292
        %v350 = vpop.permute.xlu0 %349
        %351 = vset.pattern.permute.xlu0 0
        %352 = vperm.xlu0 %351, %v293
        %v353 = vpop.permute.xlu0 %352
        %vm354 = vcmp.eq.s32.totalorder %v296, %v273
        %vm355 = vcmp.eq.s32.totalorder %v299, %v273
        %vm356 = vcmp.eq.s32.totalorder %v302, %v273
        %vm357 = vcmp.eq.s32.totalorder %v305, %v273
        %vm358 = vcmp.eq.s32.totalorder %v308, %v273
        %vm359 = vcmp.eq.s32.totalorder %v311, %v273
        %vm360 = vcmp.eq.s32.totalorder %v314, %v273
        %vm361 = vcmp.eq.s32.totalorder %v317, %v273
        %vm362 = vcmp.eq.s32.totalorder %v320, %v273
        %vm363 = vcmp.eq.s32.totalorder %v323, %v273
        %vm364 = vcmp.eq.s32.totalorder %v326, %v273
        %vm365 = vcmp.eq.s32.totalorder %v329, %v273
        %vm366 = vcmp.eq.s32.totalorder %v332, %v273
        %vm367 = vcmp.eq.s32.totalorder %v335, %v273
        %vm368 = vcmp.eq.s32.totalorder %v338, %v273
        %vm369 = vcmp.eq.s32.totalorder %v341, %v273
        %vm370 = vcmp.eq.s32.totalorder %v344, %v273
        %vm371 = vcmp.eq.s32.totalorder %v347, %v273
        %vm372 = vcmp.eq.s32.totalorder %v350, %v273
        %vm373 = vcmp.eq.s32.totalorder %v353, %v273
        %v374 = vsel %vm354, 1.0, 0.0
        %v375 = vsel %vm355, 1.0, 0.0
        %v376 = vsel %vm356, 1.0, 0.0
        %v377 = vsel %vm357, 1.0, 0.0
        %v378 = vsel %vm358, 1.0, 0.0
        %v379 = vsel %vm359, 1.0, 0.0
        %v380 = vsel %vm360, 1.0, 0.0
        %v381 = vsel %vm361, 1.0, 0.0
        %v382 = vsel %vm362, 1.0, 0.0
        %v383 = vsel %vm363, 1.0, 0.0
        %v384 = vsel %vm364, 1.0, 0.0
        %v385 = vsel %vm365, 1.0, 0.0
        %v386 = vsel %vm366, 1.0, 0.0
        %v387 = vsel %vm367, 1.0, 0.0
        %v388 = vsel %vm368, 1.0, 0.0
        %v389 = vsel %vm369, 1.0, 0.0
        %v390 = vsel %vm370, 1.0, 0.0
        %v391 = vsel %vm371, 1.0, 0.0
        %v392 = vsel %vm372, 1.0, 0.0
        %v393 = vsel %vm373, 1.0, 0.0
        %v394 = vld [vmem:[#allocation2] sm:$0xff]
        %v395 = vld [vmem:[#allocation2 + $0x8] sm:$0xff]
        %v396 = vld [vmem:[#allocation2 + $0x10] sm:$0xff]
        %v397 = vld [vmem:[#allocation2 + $0x18] sm:$0xff]
        %v398 = vld [vmem:[#allocation2 + $0x20] sm:$0xff]
        %v399 = vld [vmem:[#allocation2 + $0x28] sm:$0xff]
        %v400 = vld [vmem:[#allocation2 + $0x30] sm:$0xff]
        %v401 = vld [vmem:[#allocation2 + $0x38] sm:$0xff]
        %v402 = vld [vmem:[#allocation2 + $0x40] sm:$0xff]
        %v403 = vld [vmem:[#allocation2 + $0x48] sm:$0xff]
        %v404 = vld [vmem:[#allocation2 + $0x50] sm:$0xff]
        %v405 = vld [vmem:[#allocation2 + $0x58] sm:$0xff]
        %v406 = vld [vmem:[#allocation2 + $0x60] sm:$0xff]
        %v407 = vld [vmem:[#allocation2 + $0x68] sm:$0xff]
        %v408 = vld [vmem:[#allocation2 + $0x70] sm:$0xff]
        %v409 = vld [vmem:[#allocation2 + $0x78] sm:$0xff]
        %v410 = vld [vmem:[#allocation2 + $0x80] sm:$0xff]
        %v411 = vld [vmem:[#allocation2 + $0x88] sm:$0xff]
        %v412 = vld [vmem:[#allocation2 + $0x90] sm:$0xff]
        %v413 = vld [vmem:[#allocation2 + $0x98] sm:$0xff]
        %v414 = vld [vmem:[#allocation2 + $0xa0] sm:$0xff]
        %v415 = vld [vmem:[#allocation2 + $0xa8] sm:$0xff]
        %v416 = vld [vmem:[#allocation2 + $0xb0] sm:$0xff]
        %v417 = vld [vmem:[#allocation2 + $0xb8] sm:$0xff]
        %v418 = vld [vmem:[#allocation2 + $0xc0] sm:$0xff]
        %v419 = vld [vmem:[#allocation2 + $0xc8] sm:$0xff]
        %v420 = vld [vmem:[#allocation2 + $0xd0] sm:$0xff]
        %v421 = vld [vmem:[#allocation2 + $0xd8] sm:$0xff]
        %v422 = vld [vmem:[#allocation2 + $0xe0] sm:$0xff]
        %v423 = vld [vmem:[#allocation2 + $0xe8] sm:$0xff]
        %v424 = vld [vmem:[#allocation2 + $0xf0] sm:$0xff]
        %v425 = vld [vmem:[#allocation2 + $0xf8] sm:$0xff]
        %v426 = vld [vmem:[#allocation2 + $0x100] sm:$0xff]
        %v427 = vld [vmem:[#allocation2 + $0x108] sm:$0xff]
        %v428 = vld [vmem:[#allocation2 + $0x110] sm:$0xff]
        %v429 = vld [vmem:[#allocation2 + $0x118] sm:$0xff]
        %v430 = vld [vmem:[#allocation2 + $0x120] sm:$0xff]
        %v431 = vld [vmem:[#allocation2 + $0x128] sm:$0xff]
        %v432 = vld [vmem:[#allocation2 + $0x130] sm:$0xff]
        %v433 = vld [vmem:[#allocation2 + $0x138] sm:$0xff]
        %vm434 = vcmask 64512
        %v436 = vsel %vm434, %v374, 0
        %v439 = vsel %vm434, %v375, 0
        %v442 = vsel %vm434, %v376, 0
        %v445 = vsel %vm434, %v377, 0
        %v448 = vsel %vm434, %v378, 0
        %v451 = vsel %vm434, %v379, 0
        %v454 = vsel %vm434, %v380, 0
        %v457 = vsel %vm434, %v381, 0
        %v460 = vsel %vm434, %v382, 0
        %v463 = vsel %vm434, %v383, 0
        %v466 = vsel %vm434, %v384, 0
        %v469 = vsel %vm434, %v385, 0
        %v472 = vsel %vm434, %v386, 0
        %v475 = vsel %vm434, %v387, 0
        %v478 = vsel %vm434, %v388, 0
        %v481 = vsel %vm434, %v389, 0
        %v484 = vsel %vm434, %v390, 0
        %v487 = vsel %vm434, %v391, 0
        %v490 = vsel %vm434, %v392, 0
        %v493 = vsel %vm434, %v393, 0
        %v495 = vand.u32 %v251, 4294901760
        %496 = vmatprep.subr.mxu0 %v495
        %v497 = vand.u32 %v250, 4294901760
        %498 = vmatpush1.msra.mxu0 %v497
        %499 = vmatprep.subr.mxu0 0.0
        %500 = vmatpush1.msra.mxu0 0.0
        %501 = vmatprep.subr.mxu0 0.0
        %502 = vmatpush1.msra.mxu0 0.0
        %503 = vmatprep.subr.mxu0 0.0
        %504 = vmatpush1.msra.mxu0 0.0
        %505 = vmatprep.subr.mxu0 0.0
        %506 = vmatpush1.msra.mxu0 0.0
        %507 = vmatprep.subr.mxu0 0.0
        %508 = vmatpush1.msra.mxu0 0.0
        %509 = vmatprep.subr.mxu0 0.0
        %510 = vmatpush1.msra.mxu0 0.0
        %511 = vmatprep.subr.mxu0 0.0
        %512 = vmatpush1.msra.mxu0 0.0
        %513 = vmatprep.subr.mxu0 0.0
        %514 = vmatpush1.msra.mxu0 0.0
        %515 = vmatprep.subr.mxu0 0.0
        %516 = vmatpush1.msra.mxu0 0.0
        %517 = vmatprep.subr.mxu0 0.0
        %518 = vmatpush1.msra.mxu0 0.0
        %519 = vmatprep.subr.mxu0 0.0
        %520 = vmatpush1.msra.mxu0 0.0
        %521 = vmatprep.subr.mxu0 0.0
        %522 = vmatpush1.msra.mxu0 0.0
        %523 = vmatprep.subr.mxu0 0.0
        %524 = vmatpush1.msra.mxu0 0.0
        %525 = vmatprep.subr.mxu0 0.0
        %526 = vmatpush1.msra.mxu0 0.0
        %527 = vmatprep.subr.mxu0 0.0
        %528 = vmatpush1.msra.mxu0 0.0
        %529 = vmatprep.subr.mxu0 0.0
        %530 = vmatpush1.msra.mxu0 0.0
        %531 = vmatprep.subr.mxu0 0.0
        %532 = vmatpush1.msra.mxu0 0.0
        %533 = vmatprep.subr.mxu0 0.0
        %534 = vmatpush1.msra.mxu0 0.0
        %535 = vmatprep.subr.mxu0 0.0
        %536 = vmatpush1.msra.mxu0 0.0
        %537 = vmatprep.subr.mxu0 0.0
        %538 = vmatpush1.msra.mxu0 0.0
        %539 = vmatprep.subr.mxu0 0.0
        %540 = vmatpush1.msra.mxu0 0.0
        %541 = vmatprep.subr.mxu0 0.0
        %542 = vmatpush1.msra.mxu0 0.0
        %543 = vmatprep.subr.mxu0 0.0
        %544 = vmatpush1.msra.mxu0 0.0
        %545 = vmatprep.subr.mxu0 0.0
        %546 = vmatpush1.msra.mxu0 0.0
        %547 = vmatprep.subr.mxu0 0.0
        %548 = vmatpush1.msra.mxu0 0.0
        %549 = vmatprep.subr.mxu0 0.0
        %550 = vmatpush1.msra.mxu0 0.0
        %551 = vmatprep.subr.mxu0 0.0
        %552 = vmatpush1.msra.mxu0 0.0
        %553 = vmatprep.subr.mxu0 0.0
        %554 = vmatpush1.msra.mxu0 0.0
        %555 = vmatprep.subr.mxu0 0.0
        %556 = vmatpush1.msra.mxu0 0.0
        %557 = vmatprep.subr.mxu0 0.0
        %558 = vmatpush1.msra.mxu0 0.0
        %559 = vmatprep.subr.mxu0 0.0
        %560 = vmatpush1.msra.mxu0 0.0
        %561 = vmatprep.mubr.f32.mxu0 0.0
        %v562 = vand.u32 %v436, 4294901760
        %v563 = vsub.f32 %v436, %v562
        %v564 = vand.u32 %v563, 4294901760
        %v565 = vsub.f32 %v563, %v564
        %v566 = vand.u32 %v565, 4294901760
        %567 = vmatmul.mubr.f32.gmra.mrb[0].mxu0 %v566
        %v568 = vpop.f32.mrb[0].mxu0
        %v569 = vadd.f32 0.0, %v568
        %v570 = vpop.f32.mrb[0].mxu0
        %v571 = vadd.f32 0.0, %v570
        %572 = vmatprep.mubr.f32.mxu0 0.0
        %v573 = vand.u32 %v439, 4294901760
        %v574 = vsub.f32 %v439, %v573
        %v575 = vand.u32 %v574, 4294901760
        %v576 = vsub.f32 %v574, %v575
        %v577 = vand.u32 %v576, 4294901760
        %578 = vmatmul.mubr.f32.gmra.mrb[0].mxu0 %v577
        %v579 = vpop.f32.mrb[0].mxu0
        %v580 = vadd.f32 0.0, %v579
        %v581 = vpop.f32.mrb[0].mxu0
        %v582 = vadd.f32 0.0, %v581
        %583 = vmatprep.mubr.f32.mxu0 0.0
        %v584 = vand.u32 %v442, 4294901760
        %v585 = vsub.f32 %v442, %v584
        %v586 = vand.u32 %v585, 4294901760
        %v587 = vsub.f32 %v585, %v586
        %v588 = vand.u32 %v587, 4294901760
        %589 = vmatmul.mubr.f32.gmra.mrb[0].mxu0 %v588
        %v590 = vpop.f32.mrb[0].mxu0
        %v591 = vadd.f32 0.0, %v590
        %v592 = vpop.f32.mrb[0].mxu0
        %v593 = vadd.f32 0.0, %v592
        %594 = vmatprep.mubr.f32.mxu0 0.0
        %v595 = vand.u32 %v445, 4294901760
        %v596 = vsub.f32 %v445, %v595
        %v597 = vand.u32 %v596, 4294901760
        %v598 = vsub.f32 %v596, %v597
        %v599 = vand.u32 %v598, 4294901760
        %600 = vmatmul.mubr.f32.gmra.mrb[0].mxu0 %v599
        %v601 = vpop.f32.mrb[0].mxu0
        %v602 = vadd.f32 0.0, %v601
        %v603 = vpop.f32.mrb[0].mxu0
        %v604 = vadd.f32 0.0, %v603
        %605 = vmatprep.mubr.f32.mxu0 0.0
        %v606 = vand.u32 %v448, 4294901760
        %v607 = vsub.f32 %v448, %v606
        %v608 = vand.u32 %v607, 4294901760
        %v609 = vsub.f32 %v607, %v608
        %v610 = vand.u32 %v609, 4294901760
        %611 = vmatmul.mubr.f32.gmra.mrb[0].mxu0 %v610
        %v612 = vpop.f32.mrb[0].mxu0
        %v613 = vadd.f32 0.0, %v612
        %v614 = vpop.f32.mrb[0].mxu0
        %v615 = vadd.f32 0.0, %v614
        %616 = vmatprep.mubr.f32.mxu0 0.0
        %v617 = vand.u32 %v451, 4294901760
        %v618 = vsub.f32 %v451, %v617
        %v619 = vand.u32 %v618, 4294901760
        %v620 = vsub.f32 %v618, %v619
        %v621 = vand.u32 %v620, 4294901760
        %622 = vmatmul.mubr.f32.gmra.mrb[0].mxu0 %v621
        %v623 = vpop.f32.mrb[0].mxu0
        %v624 = vadd.f32 0.0, %v623
        %v625 = vpop.f32.mrb[0].mxu0
        %v626 = vadd.f32 0.0, %v625
        %627 = vmatprep.mubr.f32.mxu0 0.0
        %v628 = vand.u32 %v454, 4294901760
        %v629 = vsub.f32 %v454, %v628
        %v630 = vand.u32 %v629, 4294901760
        %v631 = vsub.f32 %v629, %v630
        %v632 = vand.u32 %v631, 4294901760
        %633 = vmatmul.mubr.f32.gmra.mrb[0].mxu0 %v632
        %v634 = vpop.f32.mrb[0].mxu0
        %v635 = vadd.f32 0.0, %v634
        %v636 = vpop.f32.mrb[0].mxu0
        %v637 = vadd.f32 0.0, %v636
        %638 = vmatprep.mubr.f32.mxu0 0.0
        %v639 = vand.u32 %v457, 4294901760
        %v640 = vsub.f32 %v457, %v639
        %v641 = vand.u32 %v640, 4294901760
        %v642 = vsub.f32 %v640, %v641
        %v643 = vand.u32 %v642, 4294901760
        %644 = vmatmul.mubr.f32.gmra.mrb[0].mxu0 %v643
        %v645 = vpop.f32.mrb[0].mxu0
        %v646 = vadd.f32 0.0, %v645
        %v647 = vpop.f32.mrb[0].mxu0
        %v648 = vadd.f32 0.0, %v647
        %649 = vmatprep.mubr.f32.mxu0 0.0
        %v650 = vand.u32 %v460, 4294901760
        %v651 = vsub.f32 %v460, %v650
        %v652 = vand.u32 %v651, 4294901760
        %v653 = vsub.f32 %v651, %v652
        %v654 = vand.u32 %v653, 4294901760
        %655 = vmatmul.mubr.f32.gmra.mrb[0].mxu0 %v654
        %v656 = vpop.f32.mrb[0].mxu0
        %v657 = vadd.f32 0.0, %v656
        %v658 = vpop.f32.mrb[0].mxu0
        %v659 = vadd.f32 0.0, %v658
        %660 = vmatprep.mubr.f32.mxu0 0.0
        %v661 = vand.u32 %v463, 4294901760
        %v662 = vsub.f32 %v463, %v661
        %v663 = vand.u32 %v662, 4294901760
        %v664 = vsub.f32 %v662, %v663
        %v665 = vand.u32 %v664, 4294901760
        %666 = vmatmul.mubr.f32.gmra.mrb[0].mxu0 %v665
        %v667 = vpop.f32.mrb[0].mxu0
        %v668 = vadd.f32 0.0, %v667
        %v669 = vpop.f32.mrb[0].mxu0
        %v670 = vadd.f32 0.0, %v669
        %671 = vmatprep.mubr.f32.mxu0 0.0
        %v672 = vand.u32 %v466, 4294901760
        %v673 = vsub.f32 %v466, %v672
        %v674 = vand.u32 %v673, 4294901760
        %v675 = vsub.f32 %v673, %v674
        %v676 = vand.u32 %v675, 4294901760
        %677 = vmatmul.mubr.f32.gmra.mrb[0].mxu0 %v676
        %v678 = vpop.f32.mrb[0].mxu0
        %v679 = vadd.f32 0.0, %v678
        %v680 = vpop.f32.mrb[0].mxu0
        %v681 = vadd.f32 0.0, %v680
        %682 = vmatprep.mubr.f32.mxu0 0.0
        %v683 = vand.u32 %v469, 4294901760
        %v684 = vsub.f32 %v469, %v683
        %v685 = vand.u32 %v684, 4294901760
        %v686 = vsub.f32 %v684, %v685
        %v687 = vand.u32 %v686, 4294901760
        %688 = vmatmul.mubr.f32.gmra.mrb[0].mxu0 %v687
        %v689 = vpop.f32.mrb[0].mxu0
        %v690 = vadd.f32 0.0, %v689
        %v691 = vpop.f32.mrb[0].mxu0
        %v692 = vadd.f32 0.0, %v691
        %693 = vmatprep.mubr.f32.mxu0 0.0
        %v694 = vand.u32 %v472, 4294901760
        %v695 = vsub.f32 %v472, %v694
        %v696 = vand.u32 %v695, 4294901760
        %v697 = vsub.f32 %v695, %v696
        %v698 = vand.u32 %v697, 4294901760
        %699 = vmatmul.mubr.f32.gmra.mrb[0].mxu0 %v698
        %v700 = vpop.f32.mrb[0].mxu0
        %v701 = vadd.f32 0.0, %v700
        %v702 = vpop.f32.mrb[0].mxu0
        %v703 = vadd.f32 0.0, %v702
        %704 = vmatprep.mubr.f32.mxu0 0.0
        %v705 = vand.u32 %v475, 4294901760
        %v706 = vsub.f32 %v475, %v705
        %v707 = vand.u32 %v706, 4294901760
        %v708 = vsub.f32 %v706, %v707
        %v709 = vand.u32 %v708, 4294901760
        %710 = vmatmul.mubr.f32.gmra.mrb[0].mxu0 %v709
        %v711 = vpop.f32.mrb[0].mxu0
        %v712 = vadd.f32 0.0, %v711
        %v713 = vpop.f32.mrb[0].mxu0
        %v714 = vadd.f32 0.0, %v713
        %715 = vmatprep.mubr.f32.mxu0 0.0
        %v716 = vand.u32 %v478, 4294901760
        %v717 = vsub.f32 %v478, %v716
        %v718 = vand.u32 %v717, 4294901760
        %v719 = vsub.f32 %v717, %v718
        %v720 = vand.u32 %v719, 4294901760
        %721 = vmatmul.mubr.f32.gmra.mrb[0].mxu0 %v720
        %v722 = vpop.f32.mrb[0].mxu0
        %v723 = vadd.f32 0.0, %v722
        %v724 = vpop.f32.mrb[0].mxu0
        %v725 = vadd.f32 0.0, %v724
        %726 = vmatprep.mubr.f32.mxu0 0.0
        %v727 = vand.u32 %v481, 4294901760
        %v728 = vsub.f32 %v481, %v727
        %v729 = vand.u32 %v728, 4294901760
        %v730 = vsub.f32 %v728, %v729
        %v731 = vand.u32 %v730, 4294901760
        %732 = vmatmul.mubr.f32.gmra.mrb[0].mxu0 %v731
        %v733 = vpop.f32.mrb[0].mxu0
        %v734 = vadd.f32 0.0, %v733
        %v735 = vpop.f32.mrb[0].mxu0
        %v736 = vadd.f32 0.0, %v735
        %737 = vmatprep.mubr.f32.mxu0 0.0
        %v738 = vand.u32 %v484, 4294901760
        %v739 = vsub.f32 %v484, %v738
        %v740 = vand.u32 %v739, 4294901760
        %v741 = vsub.f32 %v739, %v740
        %v742 = vand.u32 %v741, 4294901760
        %743 = vmatmul.mubr.f32.gmra.mrb[0].mxu0 %v742
        %v744 = vpop.f32.mrb[0].mxu0
        %v745 = vadd.f32 0.0, %v744
        %v746 = vpop.f32.mrb[0].mxu0
        %v747 = vadd.f32 0.0, %v746
        %748 = vmatprep.mubr.f32.mxu0 0.0
        %v749 = vand.u32 %v487, 4294901760
        %v750 = vsub.f32 %v487, %v749
        %v751 = vand.u32 %v750, 4294901760
        %v752 = vsub.f32 %v750, %v751
        %v753 = vand.u32 %v752, 4294901760
        %754 = vmatmul.mubr.f32.gmra.mrb[0].mxu0 %v753
        %v755 = vpop.f32.mrb[0].mxu0
        %v756 = vadd.f32 0.0, %v755
        %v757 = vpop.f32.mrb[0].mxu0
        %v758 = vadd.f32 0.0, %v757
        %759 = vmatprep.mubr.f32.mxu0 0.0
        %v760 = vand.u32 %v490, 4294901760
        %v761 = vsub.f32 %v490, %v760
        %v762 = vand.u32 %v761, 4294901760
        %v763 = vsub.f32 %v761, %v762
        %v764 = vand.u32 %v763, 4294901760
        %765 = vmatmul.mubr.f32.gmra.mrb[0].mxu0 %v764
        %v766 = vpop.f32.mrb[0].mxu0
        %v767 = vadd.f32 0.0, %v766
        %v768 = vpop.f32.mrb[0].mxu0
        %v769 = vadd.f32 0.0, %v768
        %770 = vmatprep.mubr.f32.mxu0 0.0
        %v771 = vand.u32 %v493, 4294901760
        %v772 = vsub.f32 %v493, %v771
        %v773 = vand.u32 %v772, 4294901760
        %v774 = vsub.f32 %v772, %v773
        %v775 = vand.u32 %v774, 4294901760
        %776 = vmatmul.mubr.f32.gmra.mrb[0].mxu0 %v775
        %v777 = vpop.f32.mrb[0].mxu0
        %v778 = vadd.f32 0.0, %v777
        %v779 = vpop.f32.mrb[0].mxu0
        %v780 = vadd.f32 0.0, %v779
        %781 = vdwg.mxu0
        %v782 = vand.u32 %v251, 4294901760
        %v783 = vsub.f32 %v251, %v782
        %v784 = vand.u32 %v783, 4294901760
        %v785 = vsub.f32 %v783, %v784
        %v786 = vand.u32 %v785, 4294901760
        %787 = vmatprep.subr.mxu0 %v786
        %v788 = vand.u32 %v250, 4294901760
        %v789 = vsub.f32 %v250, %v788
        %v790 = vand.u32 %v789, 4294901760
        %v791 = vsub.f32 %v789, %v790
        %v792 = vand.u32 %v791, 4294901760
        %793 = vmatpush1.msra.mxu0 %v792
        %794 = vmatprep.subr.mxu0 0.0
        %795 = vmatpush1.msra.mxu0 0.0
        %796 = vmatprep.subr.mxu0 0.0
        %797 = vmatpush1.msra.mxu0 0.0
        %798 = vmatprep.subr.mxu0 0.0
        %799 = vmatpush1.msra.mxu0 0.0
        %800 = vmatprep.subr.mxu0 0.0
        %801 = vmatpush1.msra.mxu0 0.0
        %802 = vmatprep.subr.mxu0 0.0
        %803 = vmatpush1.msra.mxu0 0.0
        %804 = vmatprep.subr.mxu0 0.0
        %805 = vmatpush1.msra.mxu0 0.0
        %806 = vmatprep.subr.mxu0 0.0
        %807 = vmatpush1.msra.mxu0 0.0
        %808 = vmatprep.subr.mxu0 0.0
        %809 = vmatpush1.msra.mxu0 0.0
        %810 = vmatprep.subr.mxu0 0.0
        %811 = vmatpush1.msra.mxu0 0.0
        %812 = vmatprep.subr.mxu0 0.0
        %813 = vmatpush1.msra.mxu0 0.0
        %814 = vmatprep.subr.mxu0 0.0
        %815 = vmatpush1.msra.mxu0 0.0
        %816 = vmatprep.subr.mxu0 0.0
        %817 = vmatpush1.msra.mxu0 0.0
        %818 = vmatprep.subr.mxu0 0.0
        %819 = vmatpush1.msra.mxu0 0.0
        %820 = vmatprep.subr.mxu0 0.0
        %821 = vmatpush1.msra.mxu0 0.0
        %822 = vmatprep.subr.mxu0 0.0
        %823 = vmatpush1.msra.mxu0 0.0
        %824 = vmatprep.subr.mxu0 0.0
        %825 = vmatpush1.msra.mxu0 0.0
        %826 = vmatprep.subr.mxu0 0.0
        %827 = vmatpush1.msra.mxu0 0.0
        %828 = vmatprep.subr.mxu0 0.0
        %829 = vmatpush1.msra.mxu0 0.0
        %830 = vmatprep.subr.mxu0 0.0
        %831 = vmatpush1.msra.mxu0 0.0
        %832 = vmatprep.subr.mxu0 0.0
        %833 = vmatpush1.msra.mxu0 0.0
        %834 = vmatprep.subr.mxu0 0.0
        %835 = vmatpush1.msra.mxu0 0.0
        %836 = vmatprep.subr.mxu0 0.0
        %837 = vmatpush1.msra.mxu0 0.0
        %838 = vmatprep.subr.mxu0 0.0
        %839 = vmatpush1.msra.mxu0 0.0
        %840 = vmatprep.subr.mxu0 0.0
        %841 = vmatpush1.msra.mxu0 0.0
        %842 = vmatprep.subr.mxu0 0.0
        %843 = vmatpush1.msra.mxu0 0.0
        %844 = vmatprep.subr.mxu0 0.0
        %845 = vmatpush1.msra.mxu0 0.0
        %846 = vmatprep.subr.mxu0 0.0
        %847 = vmatpush1.msra.mxu0 0.0
        %848 = vmatprep.subr.mxu0 0.0
        %849 = vmatpush1.msra.mxu0 0.0
        %850 = vmatprep.subr.mxu0 0.0
        %851 = vmatpush1.msra.mxu0 0.0
        %852 = vmatprep.subr.mxu0 0.0
        %853 = vmatpush1.msra.mxu0 0.0
        %854 = vmatprep.subr.mxu0 0.0
        %855 = vmatpush1.msra.mxu0 0.0
        %856 = vmatprep.mubr.f32.mxu0 0.0
        %v857 = vand.u32 %v436, 4294901760
        %858 = vmatmul.mubr.f32.gmra.mrb[0].mxu0 %v857
        %v859 = vpop.f32.mrb[0].mxu0
        %v860 = vadd.f32 %v569, %v859
        %v861 = vpop.f32.mrb[0].mxu0
        %v862 = vadd.f32 %v571, %v861
        %863 = vmatprep.mubr.f32.mxu0 0.0
        %v864 = vand.u32 %v439, 4294901760
        %865 = vmatmul.mubr.f32.gmra.mrb[0].mxu0 %v864
        %v866 = vpop.f32.mrb[0].mxu0
        %v867 = vadd.f32 %v580, %v866
        %v868 = vpop.f32.mrb[0].mxu0
        %v869 = vadd.f32 %v582, %v868
        %870 = vmatprep.mubr.f32.mxu0 0.0
        %v871 = vand.u32 %v442, 4294901760
        %872 = vmatmul.mubr.f32.gmra.mrb[0].mxu0 %v871
        %v873 = vpop.f32.mrb[0].mxu0
        %v874 = vadd.f32 %v591, %v873
        %v875 = vpop.f32.mrb[0].mxu0
        %v876 = vadd.f32 %v593, %v875
        %877 = vmatprep.mubr.f32.mxu0 0.0
        %v878 = vand.u32 %v445, 4294901760
        %879 = vmatmul.mubr.f32.gmra.mrb[0].mxu0 %v878
        %v880 = vpop.f32.mrb[0].mxu0
        %v881 = vadd.f32 %v602, %v880
        %v882 = vpop.f32.mrb[0].mxu0
        %v883 = vadd.f32 %v604, %v882
        %884 = vmatprep.mubr.f32.mxu0 0.0
        %v885 = vand.u32 %v448, 4294901760
        %886 = vmatmul.mubr.f32.gmra.mrb[0].mxu0 %v885
        %v887 = vpop.f32.mrb[0].mxu0
        %v888 = vadd.f32 %v613, %v887
        %v889 = vpop.f32.mrb[0].mxu0
        %v890 = vadd.f32 %v615, %v889
        %891 = vmatprep.mubr.f32.mxu0 0.0
        %v892 = vand.u32 %v451, 4294901760
        %893 = vmatmul.mubr.f32.gmra.mrb[0].mxu0 %v892
        %v894 = vpop.f32.mrb[0].mxu0
        %v895 = vadd.f32 %v624, %v894
        %v896 = vpop.f32.mrb[0].mxu0
        %v897 = vadd.f32 %v626, %v896
        %898 = vmatprep.mubr.f32.mxu0 0.0
        %v899 = vand.u32 %v454, 4294901760
        %900 = vmatmul.mubr.f32.gmra.mrb[0].mxu0 %v899
        %v901 = vpop.f32.mrb[0].mxu0
        %v902 = vadd.f32 %v635, %v901
        %v903 = vpop.f32.mrb[0].mxu0
        %v904 = vadd.f32 %v637, %v903
        %905 = vmatprep.mubr.f32.mxu0 0.0
        %v906 = vand.u32 %v457, 4294901760
        %907 = vmatmul.mubr.f32.gmra.mrb[0].mxu0 %v906
        %v908 = vpop.f32.mrb[0].mxu0
        %v909 = vadd.f32 %v646, %v908
        %v910 = vpop.f32.mrb[0].mxu0
        %v911 = vadd.f32 %v648, %v910
        %912 = vmatprep.mubr.f32.mxu0 0.0
        %v913 = vand.u32 %v460, 4294901760
        %914 = vmatmul.mubr.f32.gmra.mrb[0].mxu0 %v913
        %v915 = vpop.f32.mrb[0].mxu0
        %v916 = vadd.f32 %v657, %v915
        %v917 = vpop.f32.mrb[0].mxu0
        %v918 = vadd.f32 %v659, %v917
        %919 = vmatprep.mubr.f32.mxu0 0.0
        %v920 = vand.u32 %v463, 4294901760
        %921 = vmatmul.mubr.f32.gmra.mrb[0].mxu0 %v920
        %v922 = vpop.f32.mrb[0].mxu0
        %v923 = vadd.f32 %v668, %v922
        %v924 = vpop.f32.mrb[0].mxu0
        %v925 = vadd.f32 %v670, %v924
        %926 = vmatprep.mubr.f32.mxu0 0.0
        %v927 = vand.u32 %v466, 4294901760
        %928 = vmatmul.mubr.f32.gmra.mrb[0].mxu0 %v927
        %v929 = vpop.f32.mrb[0].mxu0
        %v930 = vadd.f32 %v679, %v929
        %v931 = vpop.f32.mrb[0].mxu0
        %v932 = vadd.f32 %v681, %v931
        %933 = vmatprep.mubr.f32.mxu0 0.0
        %v934 = vand.u32 %v469, 4294901760
        %935 = vmatmul.mubr.f32.gmra.mrb[0].mxu0 %v934
        %v936 = vpop.f32.mrb[0].mxu0
        %v937 = vadd.f32 %v690, %v936
        %v938 = vpop.f32.mrb[0].mxu0
        %v939 = vadd.f32 %v692, %v938
        %940 = vmatprep.mubr.f32.mxu0 0.0
        %v941 = vand.u32 %v472, 4294901760
        %942 = vmatmul.mubr.f32.gmra.mrb[0].mxu0 %v941
        %v943 = vpop.f32.mrb[0].mxu0
        %v944 = vadd.f32 %v701, %v943
        %v945 = vpop.f32.mrb[0].mxu0
        %v946 = vadd.f32 %v703, %v945
        %947 = vmatprep.mubr.f32.mxu0 0.0
        %v948 = vand.u32 %v475, 4294901760
        %949 = vmatmul.mubr.f32.gmra.mrb[0].mxu0 %v948
        %v950 = vpop.f32.mrb[0].mxu0
        %v951 = vadd.f32 %v712, %v950
        %v952 = vpop.f32.mrb[0].mxu0
        %v953 = vadd.f32 %v714, %v952
        %954 = vmatprep.mubr.f32.mxu0 0.0
        %v955 = vand.u32 %v478, 4294901760
        %956 = vmatmul.mubr.f32.gmra.mrb[0].mxu0 %v955
        %v957 = vpop.f32.mrb[0].mxu0
        %v958 = vadd.f32 %v723, %v957
        %v959 = vpop.f32.mrb[0].mxu0
        %v960 = vadd.f32 %v725, %v959
        %961 = vmatprep.mubr.f32.mxu0 0.0
        %v962 = vand.u32 %v481, 4294901760
        %963 = vmatmul.mubr.f32.gmra.mrb[0].mxu0 %v962
        %v964 = vpop.f32.mrb[0].mxu0
        %v965 = vadd.f32 %v734, %v964
        %v966 = vpop.f32.mrb[0].mxu0
        %v967 = vadd.f32 %v736, %v966
        %968 = vmatprep.mubr.f32.mxu0 0.0
        %v969 = vand.u32 %v484, 4294901760
        %970 = vmatmul.mubr.f32.gmra.mrb[0].mxu0 %v969
        %v971 = vpop.f32.mrb[0].mxu0
        %v972 = vadd.f32 %v745, %v971
        %v973 = vpop.f32.mrb[0].mxu0
        %v974 = vadd.f32 %v747, %v973
        %975 = vmatprep.mubr.f32.mxu0 0.0
        %v976 = vand.u32 %v487, 4294901760
        %977 = vmatmul.mubr.f32.gmra.mrb[0].mxu0 %v976
        %v978 = vpop.f32.mrb[0].mxu0
        %v979 = vadd.f32 %v756, %v978
        %v980 = vpop.f32.mrb[0].mxu0
        %v981 = vadd.f32 %v758, %v980
        %982 = vmatprep.mubr.f32.mxu0 0.0
        %v983 = vand.u32 %v490, 4294901760
        %984 = vmatmul.mubr.f32.gmra.mrb[0].mxu0 %v983
        %v985 = vpop.f32.mrb[0].mxu0
        %v986 = vadd.f32 %v767, %v985
        %v987 = vpop.f32.mrb[0].mxu0
        %v988 = vadd.f32 %v769, %v987
        %989 = vmatprep.mubr.f32.mxu0 0.0
        %v990 = vand.u32 %v493, 4294901760
        %991 = vmatmul.mubr.f32.gmra.mrb[0].mxu0 %v990
        %v992 = vpop.f32.mrb[0].mxu0
        %v993 = vadd.f32 %v778, %v992
        %v994 = vpop.f32.mrb[0].mxu0
        %v995 = vadd.f32 %v780, %v994
        %996 = vdwg.mxu0
        %v997 = vand.u32 %v251, 4294901760
        %v998 = vsub.f32 %v251, %v997
        %999 = vmatprep.subr.mxu0 %v998
        %v1000 = vand.u32 %v250, 4294901760
        %v1001 = vsub.f32 %v250, %v1000
        %1002 = vmatpush1.msra.mxu0 %v1001
        %1003 = vmatprep.subr.mxu0 0.0
        %1004 = vmatpush1.msra.mxu0 0.0
        %1005 = vmatprep.subr.mxu0 0.0
        %1006 = vmatpush1.msra.mxu0 0.0
        %1007 = vmatprep.subr.mxu0 0.0
        %1008 = vmatpush1.msra.mxu0 0.0
        %1009 = vmatprep.subr.mxu0 0.0
        %1010 = vmatpush1.msra.mxu0 0.0
        %1011 = vmatprep.subr.mxu0 0.0
        %1012 = vmatpush1.msra.mxu0 0.0
        %1013 = vmatprep.subr.mxu0 0.0
        %1014 = vmatpush1.msra.mxu0 0.0
        %1015 = vmatprep.subr.mxu0 0.0
        %1016 = vmatpush1.msra.mxu0 0.0
        %1017 = vmatprep.subr.mxu0 0.0
        %1018 = vmatpush1.msra.mxu0 0.0
        %1019 = vmatprep.subr.mxu0 0.0
        %1020 = vmatpush1.msra.mxu0 0.0
        %1021 = vmatprep.subr.mxu0 0.0
        %1022 = vmatpush1.msra.mxu0 0.0
        %1023 = vmatprep.subr.mxu0 0.0
        %1024 = vmatpush1.msra.mxu0 0.0
        %1025 = vmatprep.subr.mxu0 0.0
        %1026 = vmatpush1.msra.mxu0 0.0
        %1027 = vmatprep.subr.mxu0 0.0
        %1028 = vmatpush1.msra.mxu0 0.0
        %1029 = vmatprep.subr.mxu0 0.0
        %1030 = vmatpush1.msra.mxu0 0.0
        %1031 = vmatprep.subr.mxu0 0.0
        %1032 = vmatpush1.msra.mxu0 0.0
        %1033 = vmatprep.subr.mxu0 0.0
        %1034 = vmatpush1.msra.mxu0 0.0
        %1035 = vmatprep.subr.mxu0 0.0
        %1036 = vmatpush1.msra.mxu0 0.0
        %1037 = vmatprep.subr.mxu0 0.0
        %1038 = vmatpush1.msra.mxu0 0.0
        %1039 = vmatprep.subr.mxu0 0.0
        %1040 = vmatpush1.msra.mxu0 0.0
        %1041 = vmatprep.subr.mxu0 0.0
        %1042 = vmatpush1.msra.mxu0 0.0
        %1043 = vmatprep.subr.mxu0 0.0
        %1044 = vmatpush1.msra.mxu0 0.0
        %1045 = vmatprep.subr.mxu0 0.0
        %1046 = vmatpush1.msra.mxu0 0.0
        %1047 = vmatprep.subr.mxu0 0.0
        %1048 = vmatpush1.msra.mxu0 0.0
        %1049 = vmatprep.subr.mxu0 0.0
        %1050 = vmatpush1.msra.mxu0 0.0
        %1051 = vmatprep.subr.mxu0 0.0
        %1052 = vmatpush1.msra.mxu0 0.0
        %1053 = vmatprep.subr.mxu0 0.0
        %1054 = vmatpush1.msra.mxu0 0.0
        %1055 = vmatprep.subr.mxu0 0.0
        %1056 = vmatpush1.msra.mxu0 0.0
        %1057 = vmatprep.subr.mxu0 0.0
        %1058 = vmatpush1.msra.mxu0 0.0
        %1059 = vmatprep.subr.mxu0 0.0
        %1060 = vmatpush1.msra.mxu0 0.0
        %1061 = vmatprep.subr.mxu0 0.0
        %1062 = vmatpush1.msra.mxu0 0.0
        %1063 = vmatprep.subr.mxu0 0.0
        %1064 = vmatpush1.msra.mxu0 0.0
        %1065 = vmatprep.mubr.f32.mxu0 0.0
        %v1066 = vand.u32 %v436, 4294901760
        %v1067 = vsub.f32 %v436, %v1066
        %1068 = vmatmul.mubr.f32.gmra.mrb[0].mxu0 %v1067
        %v1069 = vpop.f32.mrb[0].mxu0
        %v1070 = vadd.f32 %v860, %v1069
        %v1071 = vpop.f32.mrb[0].mxu0
        %v1072 = vadd.f32 %v862, %v1071
        %1073 = vmatprep.mubr.f32.mxu0 0.0
        %v1074 = vand.u32 %v439, 4294901760
        %v1075 = vsub.f32 %v439, %v1074
        %1076 = vmatmul.mubr.f32.gmra.mrb[0].mxu0 %v1075
        %v1077 = vpop.f32.mrb[0].mxu0
        %v1078 = vadd.f32 %v867, %v1077
        %v1079 = vpop.f32.mrb[0].mxu0
        %v1080 = vadd.f32 %v869, %v1079
        %1081 = vmatprep.mubr.f32.mxu0 0.0
        %v1082 = vand.u32 %v442, 4294901760
        %v1083 = vsub.f32 %v442, %v1082
        %1084 = vmatmul.mubr.f32.gmra.mrb[0].mxu0 %v1083
        %v1085 = vpop.f32.mrb[0].mxu0
        %v1086 = vadd.f32 %v874, %v1085
        %v1087 = vpop.f32.mrb[0].mxu0
        %v1088 = vadd.f32 %v876, %v1087
        %1089 = vmatprep.mubr.f32.mxu0 0.0
        %v1090 = vand.u32 %v445, 4294901760
        %v1091 = vsub.f32 %v445, %v1090
        %1092 = vmatmul.mubr.f32.gmra.mrb[0].mxu0 %v1091
        %v1093 = vpop.f32.mrb[0].mxu0
        %v1094 = vadd.f32 %v881, %v1093
        %v1095 = vpop.f32.mrb[0].mxu0
        %v1096 = vadd.f32 %v883, %v1095
        %1097 = vmatprep.mubr.f32.mxu0 0.0
        %v1098 = vand.u32 %v448, 4294901760
        %v1099 = vsub.f32 %v448, %v1098
        %1100 = vmatmul.mubr.f32.gmra.mrb[0].mxu0 %v1099
        %v1101 = vpop.f32.mrb[0].mxu0
        %v1102 = vadd.f32 %v888, %v1101
        %v1103 = vpop.f32.mrb[0].mxu0
        %v1104 = vadd.f32 %v890, %v1103
        %1105 = vmatprep.mubr.f32.mxu0 0.0
        %v1106 = vand.u32 %v451, 4294901760
        %v1107 = vsub.f32 %v451, %v1106
        %1108 = vmatmul.mubr.f32.gmra.mrb[0].mxu0 %v1107
        %v1109 = vpop.f32.mrb[0].mxu0
        %v1110 = vadd.f32 %v895, %v1109
        %v1111 = vpop.f32.mrb[0].mxu0
        %v1112 = vadd.f32 %v897, %v1111
        %1113 = vmatprep.mubr.f32.mxu0 0.0
        %v1114 = vand.u32 %v454, 4294901760
        %v1115 = vsub.f32 %v454, %v1114
        %1116 = vmatmul.mubr.f32.gmra.mrb[0].mxu0 %v1115
        %v1117 = vpop.f32.mrb[0].mxu0
        %v1118 = vadd.f32 %v902, %v1117
        %v1119 = vpop.f32.mrb[0].mxu0
        %v1120 = vadd.f32 %v904, %v1119
        %1121 = vmatprep.mubr.f32.mxu0 0.0
        %v1122 = vand.u32 %v457, 4294901760
        %v1123 = vsub.f32 %v457, %v1122
        %1124 = vmatmul.mubr.f32.gmra.mrb[0].mxu0 %v1123
        %v1125 = vpop.f32.mrb[0].mxu0
        %v1126 = vadd.f32 %v909, %v1125
        %v1127 = vpop.f32.mrb[0].mxu0
        %v1128 = vadd.f32 %v911, %v1127
        %1129 = vmatprep.mubr.f32.mxu0 0.0
        %v1130 = vand.u32 %v460, 4294901760
        %v1131 = vsub.f32 %v460, %v1130
        %1132 = vmatmul.mubr.f32.gmra.mrb[0].mxu0 %v1131
        %v1133 = vpop.f32.mrb[0].mxu0
        %v1134 = vadd.f32 %v916, %v1133
        %v1135 = vpop.f32.mrb[0].mxu0
        %v1136 = vadd.f32 %v918, %v1135
        %1137 = vmatprep.mubr.f32.mxu0 0.0
        %v1138 = vand.u32 %v463, 4294901760
        %v1139 = vsub.f32 %v463, %v1138
        %1140 = vmatmul.mubr.f32.gmra.mrb[0].mxu0 %v1139
        %v1141 = vpop.f32.mrb[0].mxu0
        %v1142 = vadd.f32 %v923, %v1141
        %v1143 = vpop.f32.mrb[0].mxu0
        %v1144 = vadd.f32 %v925, %v1143
        %1145 = vmatprep.mubr.f32.mxu0 0.0
        %v1146 = vand.u32 %v466, 4294901760
        %v1147 = vsub.f32 %v466, %v1146
        %1148 = vmatmul.mubr.f32.gmra.mrb[0].mxu0 %v1147
        %v1149 = vpop.f32.mrb[0].mxu0
        %v1150 = vadd.f32 %v930, %v1149
        %v1151 = vpop.f32.mrb[0].mxu0
        %v1152 = vadd.f32 %v932, %v1151
        %1153 = vmatprep.mubr.f32.mxu0 0.0
        %v1154 = vand.u32 %v469, 4294901760
        %v1155 = vsub.f32 %v469, %v1154
        %1156 = vmatmul.mubr.f32.gmra.mrb[0].mxu0 %v1155
        %v1157 = vpop.f32.mrb[0].mxu0
        %v1158 = vadd.f32 %v937, %v1157
        %v1159 = vpop.f32.mrb[0].mxu0
        %v1160 = vadd.f32 %v939, %v1159
        %1161 = vmatprep.mubr.f32.mxu0 0.0
        %v1162 = vand.u32 %v472, 4294901760
        %v1163 = vsub.f32 %v472, %v1162
        %1164 = vmatmul.mubr.f32.gmra.mrb[0].mxu0 %v1163
        %v1165 = vpop.f32.mrb[0].mxu0
        %v1166 = vadd.f32 %v944, %v1165
        %v1167 = vpop.f32.mrb[0].mxu0
        %v1168 = vadd.f32 %v946, %v1167
        %1169 = vmatprep.mubr.f32.mxu0 0.0
        %v1170 = vand.u32 %v475, 4294901760
        %v1171 = vsub.f32 %v475, %v1170
        %1172 = vmatmul.mubr.f32.gmra.mrb[0].mxu0 %v1171
        %v1173 = vpop.f32.mrb[0].mxu0
        %v1174 = vadd.f32 %v951, %v1173
        %v1175 = vpop.f32.mrb[0].mxu0
        %v1176 = vadd.f32 %v953, %v1175
        %1177 = vmatprep.mubr.f32.mxu0 0.0
        %v1178 = vand.u32 %v478, 4294901760
        %v1179 = vsub.f32 %v478, %v1178
        %1180 = vmatmul.mubr.f32.gmra.mrb[0].mxu0 %v1179
        %v1181 = vpop.f32.mrb[0].mxu0
        %v1182 = vadd.f32 %v958, %v1181
        %v1183 = vpop.f32.mrb[0].mxu0
        %v1184 = vadd.f32 %v960, %v1183
        %1185 = vmatprep.mubr.f32.mxu0 0.0
        %v1186 = vand.u32 %v481, 4294901760
        %v1187 = vsub.f32 %v481, %v1186
        %1188 = vmatmul.mubr.f32.gmra.mrb[0].mxu0 %v1187
        %v1189 = vpop.f32.mrb[0].mxu0
        %v1190 = vadd.f32 %v965, %v1189
        %v1191 = vpop.f32.mrb[0].mxu0
        %v1192 = vadd.f32 %v967, %v1191
        %1193 = vmatprep.mubr.f32.mxu0 0.0
        %v1194 = vand.u32 %v484, 4294901760
        %v1195 = vsub.f32 %v484, %v1194
        %1196 = vmatmul.mubr.f32.gmra.mrb[0].mxu0 %v1195
        %v1197 = vpop.f32.mrb[0].mxu0
        %v1198 = vadd.f32 %v972, %v1197
        %v1199 = vpop.f32.mrb[0].mxu0
        %v1200 = vadd.f32 %v974, %v1199
        %1201 = vmatprep.mubr.f32.mxu0 0.0
        %v1202 = vand.u32 %v487, 4294901760
        %v1203 = vsub.f32 %v487, %v1202
        %1204 = vmatmul.mubr.f32.gmra.mrb[0].mxu0 %v1203
        %v1205 = vpop.f32.mrb[0].mxu0
        %v1206 = vadd.f32 %v979, %v1205
        %v1207 = vpop.f32.mrb[0].mxu0
        %v1208 = vadd.f32 %v981, %v1207
        %1209 = vmatprep.mubr.f32.mxu0 0.0
        %v1210 = vand.u32 %v490, 4294901760
        %v1211 = vsub.f32 %v490, %v1210
        %1212 = vmatmul.mubr.f32.gmra.mrb[0].mxu0 %v1211
        %v1213 = vpop.f32.mrb[0].mxu0
        %v1214 = vadd.f32 %v986, %v1213
        %v1215 = vpop.f32.mrb[0].mxu0
        %v1216 = vadd.f32 %v988, %v1215
        %1217 = vmatprep.mubr.f32.mxu0 0.0
        %v1218 = vand.u32 %v493, 4294901760
        %v1219 = vsub.f32 %v493, %v1218
        %1220 = vmatmul.mubr.f32.gmra.mrb[0].mxu0 %v1219
        %v1221 = vpop.f32.mrb[0].mxu0
        %v1222 = vadd.f32 %v993, %v1221
        %v1223 = vpop.f32.mrb[0].mxu0
        %v1224 = vadd.f32 %v995, %v1223
        %1225 = vdwg.mxu0
        %v1226 = vand.u32 %v251, 4294901760
        %1227 = vmatprep.subr.mxu0 %v1226
        %v1228 = vand.u32 %v250, 4294901760
        %1229 = vmatpush1.msra.mxu0 %v1228
        %1230 = vmatprep.subr.mxu0 0.0
        %1231 = vmatpush1.msra.mxu0 0.0
        %1232 = vmatprep.subr.mxu0 0.0
        %1233 = vmatpush1.msra.mxu0 0.0
        %1234 = vmatprep.subr.mxu0 0.0
        %1235 = vmatpush1.msra.mxu0 0.0
        %1236 = vmatprep.subr.mxu0 0.0
        %1237 = vmatpush1.msra.mxu0 0.0
        %1238 = vmatprep.subr.mxu0 0.0
        %1239 = vmatpush1.msra.mxu0 0.0
        %1240 = vmatprep.subr.mxu0 0.0
        %1241 = vmatpush1.msra.mxu0 0.0
        %1242 = vmatprep.subr.mxu0 0.0
        %1243 = vmatpush1.msra.mxu0 0.0
        %1244 = vmatprep.subr.mxu0 0.0
        %1245 = vmatpush1.msra.mxu0 0.0
        %1246 = vmatprep.subr.mxu0 0.0
        %1247 = vmatpush1.msra.mxu0 0.0
        %1248 = vmatprep.subr.mxu0 0.0
        %1249 = vmatpush1.msra.mxu0 0.0
        %1250 = vmatprep.subr.mxu0 0.0
        %1251 = vmatpush1.msra.mxu0 0.0
        %1252 = vmatprep.subr.mxu0 0.0
        %1253 = vmatpush1.msra.mxu0 0.0
        %1254 = vmatprep.subr.mxu0 0.0
        %1255 = vmatpush1.msra.mxu0 0.0
        %1256 = vmatprep.subr.mxu0 0.0
        %1257 = vmatpush1.msra.mxu0 0.0
        %1258 = vmatprep.subr.mxu0 0.0
        %1259 = vmatpush1.msra.mxu0 0.0
        %1260 = vmatprep.subr.mxu0 0.0
        %1261 = vmatpush1.msra.mxu0 0.0
        %1262 = vmatprep.subr.mxu0 0.0
        %1263 = vmatpush1.msra.mxu0 0.0
        %1264 = vmatprep.subr.mxu0 0.0
        %1265 = vmatpush1.msra.mxu0 0.0
        %1266 = vmatprep.subr.mxu0 0.0
        %1267 = vmatpush1.msra.mxu0 0.0
        %1268 = vmatprep.subr.mxu0 0.0
        %1269 = vmatpush1.msra.mxu0 0.0
        %1270 = vmatprep.subr.mxu0 0.0
        %1271 = vmatpush1.msra.mxu0 0.0
        %1272 = vmatprep.subr.mxu0 0.0
        %1273 = vmatpush1.msra.mxu0 0.0
        %1274 = vmatprep.subr.mxu0 0.0
        %1275 = vmatpush1.msra.mxu0 0.0
        %1276 = vmatprep.subr.mxu0 0.0
        %1277 = vmatpush1.msra.mxu0 0.0
        %1278 = vmatprep.subr.mxu0 0.0
        %1279 = vmatpush1.msra.mxu0 0.0
        %1280 = vmatprep.subr.mxu0 0.0
        %1281 = vmatpush1.msra.mxu0 0.0
        %1282 = vmatprep.subr.mxu0 0.0
        %1283 = vmatpush1.msra.mxu0 0.0
        %1284 = vmatprep.subr.mxu0 0.0
        %1285 = vmatpush1.msra.mxu0 0.0
        %1286 = vmatprep.subr.mxu0 0.0
        %1287 = vmatpush1.msra.mxu0 0.0
        %1288 = vmatprep.subr.mxu0 0.0
        %1289 = vmatpush1.msra.mxu0 0.0
        %1290 = vmatprep.subr.mxu0 0.0
        %1291 = vmatpush1.msra.mxu0 0.0
        %1292 = vmatprep.mubr.f32.mxu0 0.0
        %v1293 = vand.u32 %v436, 4294901760
        %v1294 = vsub.f32 %v436, %v1293
        %v1295 = vand.u32 %v1294, 4294901760
        %1296 = vmatmul.mubr.f32.gmra.mrb[0].mxu0 %v1295
        %v1297 = vpop.f32.mrb[0].mxu0
        %v1298 = vadd.f32 %v1070, %v1297
        %v1299 = vpop.f32.mrb[0].mxu0
        %v1300 = vadd.f32 %v1072, %v1299
        %1301 = vmatprep.mubr.f32.mxu0 0.0
        %v1302 = vand.u32 %v439, 4294901760
        %v1303 = vsub.f32 %v439, %v1302
        %v1304 = vand.u32 %v1303, 4294901760
        %1305 = vmatmul.mubr.f32.gmra.mrb[0].mxu0 %v1304
        %v1306 = vpop.f32.mrb[0].mxu0
        %v1307 = vadd.f32 %v1078, %v1306
        %v1308 = vpop.f32.mrb[0].mxu0
        %v1309 = vadd.f32 %v1080, %v1308
        %1310 = vmatprep.mubr.f32.mxu0 0.0
        %v1311 = vand.u32 %v442, 4294901760
        %v1312 = vsub.f32 %v442, %v1311
        %v1313 = vand.u32 %v1312, 4294901760
        %1314 = vmatmul.mubr.f32.gmra.mrb[0].mxu0 %v1313
        %v1315 = vpop.f32.mrb[0].mxu0
        %v1316 = vadd.f32 %v1086, %v1315
        %v1317 = vpop.f32.mrb[0].mxu0
        %v1318 = vadd.f32 %v1088, %v1317
        %1319 = vmatprep.mubr.f32.mxu0 0.0
        %v1320 = vand.u32 %v445, 4294901760
        %v1321 = vsub.f32 %v445, %v1320
        %v1322 = vand.u32 %v1321, 4294901760
        %1323 = vmatmul.mubr.f32.gmra.mrb[0].mxu0 %v1322
        %v1324 = vpop.f32.mrb[0].mxu0
        %v1325 = vadd.f32 %v1094, %v1324
        %v1326 = vpop.f32.mrb[0].mxu0
        %v1327 = vadd.f32 %v1096, %v1326
        %1328 = vmatprep.mubr.f32.mxu0 0.0
        %v1329 = vand.u32 %v448, 4294901760
        %v1330 = vsub.f32 %v448, %v1329
        %v1331 = vand.u32 %v1330, 4294901760
        %1332 = vmatmul.mubr.f32.gmra.mrb[0].mxu0 %v1331
        %v1333 = vpop.f32.mrb[0].mxu0
        %v1334 = vadd.f32 %v1102, %v1333
        %v1335 = vpop.f32.mrb[0].mxu0
        %v1336 = vadd.f32 %v1104, %v1335
        %1337 = vmatprep.mubr.f32.mxu0 0.0
        %v1338 = vand.u32 %v451, 4294901760
        %v1339 = vsub.f32 %v451, %v1338
        %v1340 = vand.u32 %v1339, 4294901760
        %1341 = vmatmul.mubr.f32.gmra.mrb[0].mxu0 %v1340
        %v1342 = vpop.f32.mrb[0].mxu0
        %v1343 = vadd.f32 %v1110, %v1342
        %v1344 = vpop.f32.mrb[0].mxu0
        %v1345 = vadd.f32 %v1112, %v1344
        %1346 = vmatprep.mubr.f32.mxu0 0.0
        %v1347 = vand.u32 %v454, 4294901760
        %v1348 = vsub.f32 %v454, %v1347
        %v1349 = vand.u32 %v1348, 4294901760
        %1350 = vmatmul.mubr.f32.gmra.mrb[0].mxu0 %v1349
        %v1351 = vpop.f32.mrb[0].mxu0
        %v1352 = vadd.f32 %v1118, %v1351
        %v1353 = vpop.f32.mrb[0].mxu0
        %v1354 = vadd.f32 %v1120, %v1353
        %1355 = vmatprep.mubr.f32.mxu0 0.0
        %v1356 = vand.u32 %v457, 4294901760
        %v1357 = vsub.f32 %v457, %v1356
        %v1358 = vand.u32 %v1357, 4294901760
        %1359 = vmatmul.mubr.f32.gmra.mrb[0].mxu0 %v1358
        %v1360 = vpop.f32.mrb[0].mxu0
        %v1361 = vadd.f32 %v1126, %v1360
        %v1362 = vpop.f32.mrb[0].mxu0
        %v1363 = vadd.f32 %v1128, %v1362
        %1364 = vmatprep.mubr.f32.mxu0 0.0
        %v1365 = vand.u32 %v460, 4294901760
        %v1366 = vsub.f32 %v460, %v1365
        %v1367 = vand.u32 %v1366, 4294901760
        %1368 = vmatmul.mubr.f32.gmra.mrb[0].mxu0 %v1367
        %v1369 = vpop.f32.mrb[0].mxu0
        %v1370 = vadd.f32 %v1134, %v1369
        %v1371 = vpop.f32.mrb[0].mxu0
        %v1372 = vadd.f32 %v1136, %v1371
        %1373 = vmatprep.mubr.f32.mxu0 0.0
        %v1374 = vand.u32 %v463, 4294901760
        %v1375 = vsub.f32 %v463, %v1374
        %v1376 = vand.u32 %v1375, 4294901760
        %1377 = vmatmul.mubr.f32.gmra.mrb[0].mxu0 %v1376
        %v1378 = vpop.f32.mrb[0].mxu0
        %v1379 = vadd.f32 %v1142, %v1378
        %v1380 = vpop.f32.mrb[0].mxu0
        %v1381 = vadd.f32 %v1144, %v1380
        %1382 = vmatprep.mubr.f32.mxu0 0.0
        %v1383 = vand.u32 %v466, 4294901760
        %v1384 = vsub.f32 %v466, %v1383
        %v1385 = vand.u32 %v1384, 4294901760
        %1386 = vmatmul.mubr.f32.gmra.mrb[0].mxu0 %v1385
        %v1387 = vpop.f32.mrb[0].mxu0
        %v1388 = vadd.f32 %v1150, %v1387
        %v1389 = vpop.f32.mrb[0].mxu0
        %v1390 = vadd.f32 %v1152, %v1389
        %1391 = vmatprep.mubr.f32.mxu0 0.0
        %v1392 = vand.u32 %v469, 4294901760
        %v1393 = vsub.f32 %v469, %v1392
        %v1394 = vand.u32 %v1393, 4294901760
        %1395 = vmatmul.mubr.f32.gmra.mrb[0].mxu0 %v1394
        %v1396 = vpop.f32.mrb[0].mxu0
        %v1397 = vadd.f32 %v1158, %v1396
        %v1398 = vpop.f32.mrb[0].mxu0
        %v1399 = vadd.f32 %v1160, %v1398
        %1400 = vmatprep.mubr.f32.mxu0 0.0
        %v1401 = vand.u32 %v472, 4294901760
        %v1402 = vsub.f32 %v472, %v1401
        %v1403 = vand.u32 %v1402, 4294901760
        %1404 = vmatmul.mubr.f32.gmra.mrb[0].mxu0 %v1403
        %v1405 = vpop.f32.mrb[0].mxu0
        %v1406 = vadd.f32 %v1166, %v1405
        %v1407 = vpop.f32.mrb[0].mxu0
        %v1408 = vadd.f32 %v1168, %v1407
        %1409 = vmatprep.mubr.f32.mxu0 0.0
        %v1410 = vand.u32 %v475, 4294901760
        %v1411 = vsub.f32 %v475, %v1410
        %v1412 = vand.u32 %v1411, 4294901760
        %1413 = vmatmul.mubr.f32.gmra.mrb[0].mxu0 %v1412
        %v1414 = vpop.f32.mrb[0].mxu0
        %v1415 = vadd.f32 %v1174, %v1414
        %v1416 = vpop.f32.mrb[0].mxu0
        %v1417 = vadd.f32 %v1176, %v1416
        %1418 = vmatprep.mubr.f32.mxu0 0.0
        %v1419 = vand.u32 %v478, 4294901760
        %v1420 = vsub.f32 %v478, %v1419
        %v1421 = vand.u32 %v1420, 4294901760
        %1422 = vmatmul.mubr.f32.gmra.mrb[0].mxu0 %v1421
        %v1423 = vpop.f32.mrb[0].mxu0
        %v1424 = vadd.f32 %v1182, %v1423
        %v1425 = vpop.f32.mrb[0].mxu0
        %v1426 = vadd.f32 %v1184, %v1425
        %1427 = vmatprep.mubr.f32.mxu0 0.0
        %v1428 = vand.u32 %v481, 4294901760
        %v1429 = vsub.f32 %v481, %v1428
        %v1430 = vand.u32 %v1429, 4294901760
        %1431 = vmatmul.mubr.f32.gmra.mrb[0].mxu0 %v1430
        %v1432 = vpop.f32.mrb[0].mxu0
        %v1433 = vadd.f32 %v1190, %v1432
        %v1434 = vpop.f32.mrb[0].mxu0
        %v1435 = vadd.f32 %v1192, %v1434
        %1436 = vmatprep.mubr.f32.mxu0 0.0
        %v1437 = vand.u32 %v484, 4294901760
        %v1438 = vsub.f32 %v484, %v1437
        %v1439 = vand.u32 %v1438, 4294901760
        %1440 = vmatmul.mubr.f32.gmra.mrb[0].mxu0 %v1439
        %v1441 = vpop.f32.mrb[0].mxu0
        %v1442 = vadd.f32 %v1198, %v1441
        %v1443 = vpop.f32.mrb[0].mxu0
        %v1444 = vadd.f32 %v1200, %v1443
        %1445 = vmatprep.mubr.f32.mxu0 0.0
        %v1446 = vand.u32 %v487, 4294901760
        %v1447 = vsub.f32 %v487, %v1446
        %v1448 = vand.u32 %v1447, 4294901760
        %1449 = vmatmul.mubr.f32.gmra.mrb[0].mxu0 %v1448
        %v1450 = vpop.f32.mrb[0].mxu0
        %v1451 = vadd.f32 %v1206, %v1450
        %v1452 = vpop.f32.mrb[0].mxu0
        %v1453 = vadd.f32 %v1208, %v1452
        %1454 = vmatprep.mubr.f32.mxu0 0.0
        %v1455 = vand.u32 %v490, 4294901760
        %v1456 = vsub.f32 %v490, %v1455
        %v1457 = vand.u32 %v1456, 4294901760
        %1458 = vmatmul.mubr.f32.gmra.mrb[0].mxu0 %v1457
        %v1459 = vpop.f32.mrb[0].mxu0
        %v1460 = vadd.f32 %v1214, %v1459
        %v1461 = vpop.f32.mrb[0].mxu0
        %v1462 = vadd.f32 %v1216, %v1461
        %1463 = vmatprep.mubr.f32.mxu0 0.0
        %v1464 = vand.u32 %v493, 4294901760
        %v1465 = vsub.f32 %v493, %v1464
        %v1466 = vand.u32 %v1465, 4294901760
        %1467 = vmatmul.mubr.f32.gmra.mrb[0].mxu0 %v1466
        %v1468 = vpop.f32.mrb[0].mxu0
        %v1469 = vadd.f32 %v1222, %v1468
        %v1470 = vpop.f32.mrb[0].mxu0
        %v1471 = vadd.f32 %v1224, %v1470
        %1472 = vdwg.mxu0
        %v1473 = vand.u32 %v251, 4294901760
        %v1474 = vsub.f32 %v251, %v1473
        %v1475 = vand.u32 %v1474, 4294901760
        %1476 = vmatprep.subr.mxu0 %v1475
        %v1477 = vand.u32 %v250, 4294901760
        %v1478 = vsub.f32 %v250, %v1477
        %v1479 = vand.u32 %v1478, 4294901760
        %1480 = vmatpush1.msra.mxu0 %v1479
        %1481 = vmatprep.subr.mxu0 0.0
        %1482 = vmatpush1.msra.mxu0 0.0
        %1483 = vmatprep.subr.mxu0 0.0
        %1484 = vmatpush1.msra.mxu0 0.0
        %1485 = vmatprep.subr.mxu0 0.0
        %1486 = vmatpush1.msra.mxu0 0.0
        %1487 = vmatprep.subr.mxu0 0.0
        %1488 = vmatpush1.msra.mxu0 0.0
        %1489 = vmatprep.subr.mxu0 0.0
        %1490 = vmatpush1.msra.mxu0 0.0
        %1491 = vmatprep.subr.mxu0 0.0
        %1492 = vmatpush1.msra.mxu0 0.0
        %1493 = vmatprep.subr.mxu0 0.0
        %1494 = vmatpush1.msra.mxu0 0.0
        %1495 = vmatprep.subr.mxu0 0.0
        %1496 = vmatpush1.msra.mxu0 0.0
        %1497 = vmatprep.subr.mxu0 0.0
        %1498 = vmatpush1.msra.mxu0 0.0
        %1499 = vmatprep.subr.mxu0 0.0
        %1500 = vmatpush1.msra.mxu0 0.0
        %1501 = vmatprep.subr.mxu0 0.0
        %1502 = vmatpush1.msra.mxu0 0.0
        %1503 = vmatprep.subr.mxu0 0.0
        %1504 = vmatpush1.msra.mxu0 0.0
        %1505 = vmatprep.subr.mxu0 0.0
        %1506 = vmatpush1.msra.mxu0 0.0
        %1507 = vmatprep.subr.mxu0 0.0
        %1508 = vmatpush1.msra.mxu0 0.0
        %1509 = vmatprep.subr.mxu0 0.0
        %1510 = vmatpush1.msra.mxu0 0.0
        %1511 = vmatprep.subr.mxu0 0.0
        %1512 = vmatpush1.msra.mxu0 0.0
        %1513 = vmatprep.subr.mxu0 0.0
        %1514 = vmatpush1.msra.mxu0 0.0
        %1515 = vmatprep.subr.mxu0 0.0
        %1516 = vmatpush1.msra.mxu0 0.0
        %1517 = vmatprep.subr.mxu0 0.0
        %1518 = vmatpush1.msra.mxu0 0.0
        %1519 = vmatprep.subr.mxu0 0.0
        %1520 = vmatpush1.msra.mxu0 0.0
        %1521 = vmatprep.subr.mxu0 0.0
        %1522 = vmatpush1.msra.mxu0 0.0
        %1523 = vmatprep.subr.mxu0 0.0
        %1524 = vmatpush1.msra.mxu0 0.0
        %1525 = vmatprep.subr.mxu0 0.0
        %1526 = vmatpush1.msra.mxu0 0.0
        %1527 = vmatprep.subr.mxu0 0.0
        %1528 = vmatpush1.msra.mxu0 0.0
        %1529 = vmatprep.subr.mxu0 0.0
        %1530 = vmatpush1.msra.mxu0 0.0
        %1531 = vmatprep.subr.mxu0 0.0
        %1532 = vmatpush1.msra.mxu0 0.0
        %1533 = vmatprep.subr.mxu0 0.0
        %1534 = vmatpush1.msra.mxu0 0.0
        %1535 = vmatprep.subr.mxu0 0.0
        %1536 = vmatpush1.msra.mxu0 0.0
        %1537 = vmatprep.subr.mxu0 0.0
        %1538 = vmatpush1.msra.mxu0 0.0
        %1539 = vmatprep.subr.mxu0 0.0
        %1540 = vmatpush1.msra.mxu0 0.0
        %1541 = vmatprep.subr.mxu0 0.0
        %1542 = vmatpush1.msra.mxu0 0.0
        %1543 = vmatprep.mubr.f32.mxu0 0.0
        %v1544 = vand.u32 %v436, 4294901760
        %1545 = vmatmul.mubr.f32.gmra.mrb[0].mxu0 %v1544
        %v1546 = vpop.f32.mrb[0].mxu0
        %v1547 = vadd.f32 %v1298, %v1546
        %v1548 = vpop.f32.mrb[0].mxu0
        %v1549 = vadd.f32 %v1300, %v1548
        %1550 = vmatprep.mubr.f32.mxu0 0.0
        %v1551 = vand.u32 %v439, 4294901760
        %1552 = vmatmul.mubr.f32.gmra.mrb[0].mxu0 %v1551
        %v1553 = vpop.f32.mrb[0].mxu0
        %v1554 = vadd.f32 %v1307, %v1553
        %v1555 = vpop.f32.mrb[0].mxu0
        %v1556 = vadd.f32 %v1309, %v1555
        %1557 = vmatprep.mubr.f32.mxu0 0.0
        %v1558 = vand.u32 %v442, 4294901760
        %1559 = vmatmul.mubr.f32.gmra.mrb[0].mxu0 %v1558
        %v1560 = vpop.f32.mrb[0].mxu0
        %v1561 = vadd.f32 %v1316, %v1560
        %v1562 = vpop.f32.mrb[0].mxu0
        %v1563 = vadd.f32 %v1318, %v1562
        %1564 = vmatprep.mubr.f32.mxu0 0.0
        %v1565 = vand.u32 %v445, 4294901760
        %1566 = vmatmul.mubr.f32.gmra.mrb[0].mxu0 %v1565
        %v1567 = vpop.f32.mrb[0].mxu0
        %v1568 = vadd.f32 %v1325, %v1567
        %v1569 = vpop.f32.mrb[0].mxu0
        %v1570 = vadd.f32 %v1327, %v1569
        %1571 = vmatprep.mubr.f32.mxu0 0.0
        %v1572 = vand.u32 %v448, 4294901760
        %1573 = vmatmul.mubr.f32.gmra.mrb[0].mxu0 %v1572
        %v1574 = vpop.f32.mrb[0].mxu0
        %v1575 = vadd.f32 %v1334, %v1574
        %v1576 = vpop.f32.mrb[0].mxu0
        %v1577 = vadd.f32 %v1336, %v1576
        %1578 = vmatprep.mubr.f32.mxu0 0.0
        %v1579 = vand.u32 %v451, 4294901760
        %1580 = vmatmul.mubr.f32.gmra.mrb[0].mxu0 %v1579
        %v1581 = vpop.f32.mrb[0].mxu0
        %v1582 = vadd.f32 %v1343, %v1581
        %v1583 = vpop.f32.mrb[0].mxu0
        %v1584 = vadd.f32 %v1345, %v1583
        %1585 = vmatprep.mubr.f32.mxu0 0.0
        %v1586 = vand.u32 %v454, 4294901760
        %1587 = vmatmul.mubr.f32.gmra.mrb[0].mxu0 %v1586
        %v1588 = vpop.f32.mrb[0].mxu0
        %v1589 = vadd.f32 %v1352, %v1588
        %v1590 = vpop.f32.mrb[0].mxu0
        %v1591 = vadd.f32 %v1354, %v1590
        %1592 = vmatprep.mubr.f32.mxu0 0.0
        %v1593 = vand.u32 %v457, 4294901760
        %1594 = vmatmul.mubr.f32.gmra.mrb[0].mxu0 %v1593
        %v1595 = vpop.f32.mrb[0].mxu0
        %v1596 = vadd.f32 %v1361, %v1595
        %v1597 = vpop.f32.mrb[0].mxu0
        %v1598 = vadd.f32 %v1363, %v1597
        %1599 = vmatprep.mubr.f32.mxu0 0.0
        %v1600 = vand.u32 %v460, 4294901760
        %1601 = vmatmul.mubr.f32.gmra.mrb[0].mxu0 %v1600
        %v1602 = vpop.f32.mrb[0].mxu0
        %v1603 = vadd.f32 %v1370, %v1602
        %v1604 = vpop.f32.mrb[0].mxu0
        %v1605 = vadd.f32 %v1372, %v1604
        %1606 = vmatprep.mubr.f32.mxu0 0.0
        %v1607 = vand.u32 %v463, 4294901760
        %1608 = vmatmul.mubr.f32.gmra.mrb[0].mxu0 %v1607
        %v1609 = vpop.f32.mrb[0].mxu0
        %v1610 = vadd.f32 %v1379, %v1609
        %v1611 = vpop.f32.mrb[0].mxu0
        %v1612 = vadd.f32 %v1381, %v1611
        %1613 = vmatprep.mubr.f32.mxu0 0.0
        %v1614 = vand.u32 %v466, 4294901760
        %1615 = vmatmul.mubr.f32.gmra.mrb[0].mxu0 %v1614
        %v1616 = vpop.f32.mrb[0].mxu0
        %v1617 = vadd.f32 %v1388, %v1616
        %v1618 = vpop.f32.mrb[0].mxu0
        %v1619 = vadd.f32 %v1390, %v1618
        %1620 = vmatprep.mubr.f32.mxu0 0.0
        %v1621 = vand.u32 %v469, 4294901760
        %1622 = vmatmul.mubr.f32.gmra.mrb[0].mxu0 %v1621
        %v1623 = vpop.f32.mrb[0].mxu0
        %v1624 = vadd.f32 %v1397, %v1623
        %v1625 = vpop.f32.mrb[0].mxu0
        %v1626 = vadd.f32 %v1399, %v1625
        %1627 = vmatprep.mubr.f32.mxu0 0.0
        %v1628 = vand.u32 %v472, 4294901760
        %1629 = vmatmul.mubr.f32.gmra.mrb[0].mxu0 %v1628
        %v1630 = vpop.f32.mrb[0].mxu0
        %v1631 = vadd.f32 %v1406, %v1630
        %v1632 = vpop.f32.mrb[0].mxu0
        %v1633 = vadd.f32 %v1408, %v1632
        %1634 = vmatprep.mubr.f32.mxu0 0.0
        %v1635 = vand.u32 %v475, 4294901760
        %1636 = vmatmul.mubr.f32.gmra.mrb[0].mxu0 %v1635
        %v1637 = vpop.f32.mrb[0].mxu0
        %v1638 = vadd.f32 %v1415, %v1637
        %v1639 = vpop.f32.mrb[0].mxu0
        %v1640 = vadd.f32 %v1417, %v1639
        %1641 = vmatprep.mubr.f32.mxu0 0.0
        %v1642 = vand.u32 %v478, 4294901760
        %1643 = vmatmul.mubr.f32.gmra.mrb[0].mxu0 %v1642
        %v1644 = vpop.f32.mrb[0].mxu0
        %v1645 = vadd.f32 %v1424, %v1644
        %v1646 = vpop.f32.mrb[0].mxu0
        %v1647 = vadd.f32 %v1426, %v1646
        %1648 = vmatprep.mubr.f32.mxu0 0.0
        %v1649 = vand.u32 %v481, 4294901760
        %1650 = vmatmul.mubr.f32.gmra.mrb[0].mxu0 %v1649
        %v1651 = vpop.f32.mrb[0].mxu0
        %v1652 = vadd.f32 %v1433, %v1651
        %v1653 = vpop.f32.mrb[0].mxu0
        %v1654 = vadd.f32 %v1435, %v1653
        %1655 = vmatprep.mubr.f32.mxu0 0.0
        %v1656 = vand.u32 %v484, 4294901760
        %1657 = vmatmul.mubr.f32.gmra.mrb[0].mxu0 %v1656
        %v1658 = vpop.f32.mrb[0].mxu0
        %v1659 = vadd.f32 %v1442, %v1658
        %v1660 = vpop.f32.mrb[0].mxu0
        %v1661 = vadd.f32 %v1444, %v1660
        %1662 = vmatprep.mubr.f32.mxu0 0.0
        %v1663 = vand.u32 %v487, 4294901760
        %1664 = vmatmul.mubr.f32.gmra.mrb[0].mxu0 %v1663
        %v1665 = vpop.f32.mrb[0].mxu0
        %v1666 = vadd.f32 %v1451, %v1665
        %v1667 = vpop.f32.mrb[0].mxu0
        %v1668 = vadd.f32 %v1453, %v1667
        %1669 = vmatprep.mubr.f32.mxu0 0.0
        %v1670 = vand.u32 %v490, 4294901760
        %1671 = vmatmul.mubr.f32.gmra.mrb[0].mxu0 %v1670
        %v1672 = vpop.f32.mrb[0].mxu0
        %v1673 = vadd.f32 %v1460, %v1672
        %v1674 = vpop.f32.mrb[0].mxu0
        %v1675 = vadd.f32 %v1462, %v1674
        %1676 = vmatprep.mubr.f32.mxu0 0.0
        %v1677 = vand.u32 %v493, 4294901760
        %1678 = vmatmul.mubr.f32.gmra.mrb[0].mxu0 %v1677
        %v1679 = vpop.f32.mrb[0].mxu0
        %v1680 = vadd.f32 %v1469, %v1679
        %v1681 = vpop.f32.mrb[0].mxu0
        %v1682 = vadd.f32 %v1471, %v1681
        %1683 = vdwg.mxu0
        %v1684 = vand.u32 %v251, 4294901760
        %1685 = vmatprep.subr.mxu0 %v1684
        %v1686 = vand.u32 %v250, 4294901760
        %1687 = vmatpush1.msra.mxu0 %v1686
        %1688 = vmatprep.subr.mxu0 0.0
        %1689 = vmatpush1.msra.mxu0 0.0
        %1690 = vmatprep.subr.mxu0 0.0
        %1691 = vmatpush1.msra.mxu0 0.0
        %1692 = vmatprep.subr.mxu0 0.0
        %1693 = vmatpush1.msra.mxu0 0.0
        %1694 = vmatprep.subr.mxu0 0.0
        %1695 = vmatpush1.msra.mxu0 0.0
        %1696 = vmatprep.subr.mxu0 0.0
        %1697 = vmatpush1.msra.mxu0 0.0
        %1698 = vmatprep.subr.mxu0 0.0
        %1699 = vmatpush1.msra.mxu0 0.0
        %1700 = vmatprep.subr.mxu0 0.0
        %1701 = vmatpush1.msra.mxu0 0.0
        %1702 = vmatprep.subr.mxu0 0.0
        %1703 = vmatpush1.msra.mxu0 0.0
        %1704 = vmatprep.subr.mxu0 0.0
        %1705 = vmatpush1.msra.mxu0 0.0
        %1706 = vmatprep.subr.mxu0 0.0
        %1707 = vmatpush1.msra.mxu0 0.0
        %1708 = vmatprep.subr.mxu0 0.0
        %1709 = vmatpush1.msra.mxu0 0.0
        %1710 = vmatprep.subr.mxu0 0.0
        %1711 = vmatpush1.msra.mxu0 0.0
        %1712 = vmatprep.subr.mxu0 0.0
        %1713 = vmatpush1.msra.mxu0 0.0
        %1714 = vmatprep.subr.mxu0 0.0
        %1715 = vmatpush1.msra.mxu0 0.0
        %1716 = vmatprep.subr.mxu0 0.0
        %1717 = vmatpush1.msra.mxu0 0.0
        %1718 = vmatprep.subr.mxu0 0.0
        %1719 = vmatpush1.msra.mxu0 0.0
        %1720 = vmatprep.subr.mxu0 0.0
        %1721 = vmatpush1.msra.mxu0 0.0
        %1722 = vmatprep.subr.mxu0 0.0
        %1723 = vmatpush1.msra.mxu0 0.0
        %1724 = vmatprep.subr.mxu0 0.0
        %1725 = vmatpush1.msra.mxu0 0.0
        %1726 = vmatprep.subr.mxu0 0.0
        %1727 = vmatpush1.msra.mxu0 0.0
        %1728 = vmatprep.subr.mxu0 0.0
        %1729 = vmatpush1.msra.mxu0 0.0
        %1730 = vmatprep.subr.mxu0 0.0
        %1731 = vmatpush1.msra.mxu0 0.0
        %1732 = vmatprep.subr.mxu0 0.0
        %1733 = vmatpush1.msra.mxu0 0.0
        %1734 = vmatprep.subr.mxu0 0.0
        %1735 = vmatpush1.msra.mxu0 0.0
        %1736 = vmatprep.subr.mxu0 0.0
        %1737 = vmatpush1.msra.mxu0 0.0
        %1738 = vmatprep.subr.mxu0 0.0
        %1739 = vmatpush1.msra.mxu0 0.0
        %1740 = vmatprep.subr.mxu0 0.0
        %1741 = vmatpush1.msra.mxu0 0.0
        %1742 = vmatprep.subr.mxu0 0.0
        %1743 = vmatpush1.msra.mxu0 0.0
        %1744 = vmatprep.subr.mxu0 0.0
        %1745 = vmatpush1.msra.mxu0 0.0
        %1746 = vmatprep.subr.mxu0 0.0
        %1747 = vmatpush1.msra.mxu0 0.0
        %1748 = vmatprep.subr.mxu0 0.0
        %1749 = vmatpush1.msra.mxu0 0.0
        %1750 = vmatprep.mubr.f32.mxu0 0.0
        %v1751 = vand.u32 %v436, 4294901760
        %1752 = vmatmul.mubr.f32.gmra.mrb[0].mxu0 %v1751
        %v1753 = vpop.f32.mrb[0].mxu0
        %v1754 = vadd.f32 %v1547, %v1753
        %v1755 = vpop.f32.mrb[0].mxu0
        %v1756 = vadd.f32 %v1549, %v1755
        %1757 = vmatprep.mubr.f32.mxu0 0.0
        %v1758 = vand.u32 %v439, 4294901760
        %1759 = vmatmul.mubr.f32.gmra.mrb[0].mxu0 %v1758
        %v1760 = vpop.f32.mrb[0].mxu0
        %v1761 = vadd.f32 %v1554, %v1760
        %v1762 = vpop.f32.mrb[0].mxu0
        %v1763 = vadd.f32 %v1556, %v1762
        %1764 = vmatprep.mubr.f32.mxu0 0.0
        %v1765 = vand.u32 %v442, 4294901760
        %1766 = vmatmul.mubr.f32.gmra.mrb[0].mxu0 %v1765
        %v1767 = vpop.f32.mrb[0].mxu0
        %v1768 = vadd.f32 %v1561, %v1767
        %v1769 = vpop.f32.mrb[0].mxu0
        %v1770 = vadd.f32 %v1563, %v1769
        %1771 = vmatprep.mubr.f32.mxu0 0.0
        %v1772 = vand.u32 %v445, 4294901760
        %1773 = vmatmul.mubr.f32.gmra.mrb[0].mxu0 %v1772
        %v1774 = vpop.f32.mrb[0].mxu0
        %v1775 = vadd.f32 %v1568, %v1774
        %v1776 = vpop.f32.mrb[0].mxu0
        %v1777 = vadd.f32 %v1570, %v1776
        %1778 = vmatprep.mubr.f32.mxu0 0.0
        %v1779 = vand.u32 %v448, 4294901760
        %1780 = vmatmul.mubr.f32.gmra.mrb[0].mxu0 %v1779
        %v1781 = vpop.f32.mrb[0].mxu0
        %v1782 = vadd.f32 %v1575, %v1781
        %v1783 = vpop.f32.mrb[0].mxu0
        %v1784 = vadd.f32 %v1577, %v1783
        %1785 = vmatprep.mubr.f32.mxu0 0.0
        %v1786 = vand.u32 %v451, 4294901760
        %1787 = vmatmul.mubr.f32.gmra.mrb[0].mxu0 %v1786
        %v1788 = vpop.f32.mrb[0].mxu0
        %v1789 = vadd.f32 %v1582, %v1788
        %v1790 = vpop.f32.mrb[0].mxu0
        %v1791 = vadd.f32 %v1584, %v1790
        %1792 = vmatprep.mubr.f32.mxu0 0.0
        %v1793 = vand.u32 %v454, 4294901760
        %1794 = vmatmul.mubr.f32.gmra.mrb[0].mxu0 %v1793
        %v1795 = vpop.f32.mrb[0].mxu0
        %v1796 = vadd.f32 %v1589, %v1795
        %v1797 = vpop.f32.mrb[0].mxu0
        %v1798 = vadd.f32 %v1591, %v1797
        %1799 = vmatprep.mubr.f32.mxu0 0.0
        %v1800 = vand.u32 %v457, 4294901760
        %1801 = vmatmul.mubr.f32.gmra.mrb[0].mxu0 %v1800
        %v1802 = vpop.f32.mrb[0].mxu0
        %v1803 = vadd.f32 %v1596, %v1802
        %v1804 = vpop.f32.mrb[0].mxu0
        %v1805 = vadd.f32 %v1598, %v1804
        %1806 = vmatprep.mubr.f32.mxu0 0.0
        %v1807 = vand.u32 %v460, 4294901760
        %1808 = vmatmul.mubr.f32.gmra.mrb[0].mxu0 %v1807
        %v1809 = vpop.f32.mrb[0].mxu0
        %v1810 = vadd.f32 %v1603, %v1809
        %v1811 = vpop.f32.mrb[0].mxu0
        %v1812 = vadd.f32 %v1605, %v1811
        %1813 = vmatprep.mubr.f32.mxu0 0.0
        %v1814 = vand.u32 %v463, 4294901760
        %1815 = vmatmul.mubr.f32.gmra.mrb[0].mxu0 %v1814
        %v1816 = vpop.f32.mrb[0].mxu0
        %v1817 = vadd.f32 %v1610, %v1816
        %v1818 = vpop.f32.mrb[0].mxu0
        %v1819 = vadd.f32 %v1612, %v1818
        %1820 = vmatprep.mubr.f32.mxu0 0.0
        %v1821 = vand.u32 %v466, 4294901760
        %1822 = vmatmul.mubr.f32.gmra.mrb[0].mxu0 %v1821
        %v1823 = vpop.f32.mrb[0].mxu0
        %v1824 = vadd.f32 %v1617, %v1823
        %v1825 = vpop.f32.mrb[0].mxu0
        %v1826 = vadd.f32 %v1619, %v1825
        %1827 = vmatprep.mubr.f32.mxu0 0.0
        %v1828 = vand.u32 %v469, 4294901760
        %1829 = vmatmul.mubr.f32.gmra.mrb[0].mxu0 %v1828
        %v1830 = vpop.f32.mrb[0].mxu0
        %v1831 = vadd.f32 %v1624, %v1830
        %v1832 = vpop.f32.mrb[0].mxu0
        %v1833 = vadd.f32 %v1626, %v1832
        %1834 = vmatprep.mubr.f32.mxu0 0.0
        %v1835 = vand.u32 %v472, 4294901760
        %1836 = vmatmul.mubr.f32.gmra.mrb[0].mxu0 %v1835
        %v1837 = vpop.f32.mrb[0].mxu0
        %v1838 = vadd.f32 %v1631, %v1837
        %v1839 = vpop.f32.mrb[0].mxu0
        %v1840 = vadd.f32 %v1633, %v1839
        %1841 = vmatprep.mubr.f32.mxu0 0.0
        %v1842 = vand.u32 %v475, 4294901760
        %1843 = vmatmul.mubr.f32.gmra.mrb[0].mxu0 %v1842
        %v1844 = vpop.f32.mrb[0].mxu0
        %v1845 = vadd.f32 %v1638, %v1844
        %v1846 = vpop.f32.mrb[0].mxu0
        %v1847 = vadd.f32 %v1640, %v1846
        %1848 = vmatprep.mubr.f32.mxu0 0.0
        %v1849 = vand.u32 %v478, 4294901760
        %1850 = vmatmul.mubr.f32.gmra.mrb[0].mxu0 %v1849
        %v1851 = vpop.f32.mrb[0].mxu0
        %v1852 = vadd.f32 %v1645, %v1851
        %v1853 = vpop.f32.mrb[0].mxu0
        %v1854 = vadd.f32 %v1647, %v1853
        %1855 = vmatprep.mubr.f32.mxu0 0.0
        %v1856 = vand.u32 %v481, 4294901760
        %1857 = vmatmul.mubr.f32.gmra.mrb[0].mxu0 %v1856
        %v1858 = vpop.f32.mrb[0].mxu0
        %v1859 = vadd.f32 %v1652, %v1858
        %v1860 = vpop.f32.mrb[0].mxu0
        %v1861 = vadd.f32 %v1654, %v1860
        %1862 = vmatprep.mubr.f32.mxu0 0.0
        %v1863 = vand.u32 %v484, 4294901760
        %1864 = vmatmul.mubr.f32.gmra.mrb[0].mxu0 %v1863
        %v1865 = vpop.f32.mrb[0].mxu0
        %v1866 = vadd.f32 %v1659, %v1865
        %v1867 = vpop.f32.mrb[0].mxu0
        %v1868 = vadd.f32 %v1661, %v1867
        %1869 = vmatprep.mubr.f32.mxu0 0.0
        %v1870 = vand.u32 %v487, 4294901760
        %1871 = vmatmul.mubr.f32.gmra.mrb[0].mxu0 %v1870
        %v1872 = vpop.f32.mrb[0].mxu0
        %v1873 = vadd.f32 %v1666, %v1872
        %v1874 = vpop.f32.mrb[0].mxu0
        %v1875 = vadd.f32 %v1668, %v1874
        %1876 = vmatprep.mubr.f32.mxu0 0.0
        %v1877 = vand.u32 %v490, 4294901760
        %1878 = vmatmul.mubr.f32.gmra.mrb[0].mxu0 %v1877
        %v1879 = vpop.f32.mrb[0].mxu0
        %v1880 = vadd.f32 %v1673, %v1879
        %v1881 = vpop.f32.mrb[0].mxu0
        %v1882 = vadd.f32 %v1675, %v1881
        %1883 = vmatprep.mubr.f32.mxu0 0.0
        %v1884 = vand.u32 %v493, 4294901760
        %1885 = vmatmul.mubr.f32.gmra.mrb[0].mxu0 %v1884
        %v1886 = vpop.f32.mrb[0].mxu0
        %v1887 = vadd.f32 %v1680, %v1886
        %v1888 = vpop.f32.mrb[0].mxu0
        %v1889 = vadd.f32 %v1682, %v1888
        %1890 = vdwg.mxu0
        %v1891 = vadd.f32 %v394, %v1754
        %v1892 = vadd.f32 %v395, %v1756
        %v1893 = vadd.f32 %v396, %v1761
        %v1894 = vadd.f32 %v397, %v1763
        %v1895 = vadd.f32 %v398, %v1768
        %v1896 = vadd.f32 %v399, %v1770
        %v1897 = vadd.f32 %v400, %v1775
        %v1898 = vadd.f32 %v401, %v1777
        %v1899 = vadd.f32 %v402, %v1782
        %v1900 = vadd.f32 %v403, %v1784
        %v1901 = vadd.f32 %v404, %v1789
        %v1902 = vadd.f32 %v405, %v1791
        %v1903 = vadd.f32 %v406, %v1796
        %v1904 = vadd.f32 %v407, %v1798
        %v1905 = vadd.f32 %v408, %v1803
        %v1906 = vadd.f32 %v409, %v1805
        %v1907 = vadd.f32 %v410, %v1810
        %v1908 = vadd.f32 %v411, %v1812
        %v1909 = vadd.f32 %v412, %v1817
        %v1910 = vadd.f32 %v413, %v1819
        %v1911 = vadd.f32 %v414, %v1824
        %v1912 = vadd.f32 %v415, %v1826
        %v1913 = vadd.f32 %v416, %v1831
        %v1914 = vadd.f32 %v417, %v1833
        %v1915 = vadd.f32 %v418, %v1838
        %v1916 = vadd.f32 %v419, %v1840
        %v1917 = vadd.f32 %v420, %v1845
        %v1918 = vadd.f32 %v421, %v1847
        %v1919 = vadd.f32 %v422, %v1852
        %v1920 = vadd.f32 %v423, %v1854
        %v1921 = vadd.f32 %v424, %v1859
        %v1922 = vadd.f32 %v425, %v1861
        %v1923 = vadd.f32 %v426, %v1866
        %v1924 = vadd.f32 %v427, %v1868
        %v1925 = vadd.f32 %v428, %v1873
        %v1926 = vadd.f32 %v429, %v1875
        %v1927 = vadd.f32 %v430, %v1880
        %v1928 = vadd.f32 %v431, %v1882
        %v1929 = vadd.f32 %v432, %v1887
        %v1930 = vadd.f32 %v433, %v1889
        %1931 = vst [vmem:[#allocation2] sm:$0xff] %v1891
        %1932 = vst [vmem:[#allocation2 + $0x8] sm:$0xff] %v1892
        %1933 = vst [vmem:[#allocation2 + $0x10] sm:$0xff] %v1893
        %1934 = vst [vmem:[#allocation2 + $0x18] sm:$0xff] %v1894
        %1935 = vst [vmem:[#allocation2 + $0x20] sm:$0xff] %v1895
        %1936 = vst [vmem:[#allocation2 + $0x28] sm:$0xff] %v1896
        %1937 = vst [vmem:[#allocation2 + $0x30] sm:$0xff] %v1897
        %1938 = vst [vmem:[#allocation2 + $0x38] sm:$0xff] %v1898
        %1939 = vst [vmem:[#allocation2 + $0x40] sm:$0xff] %v1899
        %1940 = vst [vmem:[#allocation2 + $0x48] sm:$0xff] %v1900
        %1941 = vst [vmem:[#allocation2 + $0x50] sm:$0xff] %v1901
        %1942 = vst [vmem:[#allocation2 + $0x58] sm:$0xff] %v1902
        %1943 = vst [vmem:[#allocation2 + $0x60] sm:$0xff] %v1903
        %1944 = vst [vmem:[#allocation2 + $0x68] sm:$0xff] %v1904
        %1945 = vst [vmem:[#allocation2 + $0x70] sm:$0xff] %v1905
        %1946 = vst [vmem:[#allocation2 + $0x78] sm:$0xff] %v1906
        %1947 = vst [vmem:[#allocation2 + $0x80] sm:$0xff] %v1907
        %1948 = vst [vmem:[#allocation2 + $0x88] sm:$0xff] %v1908
        %1949 = vst [vmem:[#allocation2 + $0x90] sm:$0xff] %v1909
        %1950 = vst [vmem:[#allocation2 + $0x98] sm:$0xff] %v1910
        %1951 = vst [vmem:[#allocation2 + $0xa0] sm:$0xff] %v1911
        %1952 = vst [vmem:[#allocation2 + $0xa8] sm:$0xff] %v1912
        %1953 = vst [vmem:[#allocation2 + $0xb0] sm:$0xff] %v1913
        %1954 = vst [vmem:[#allocation2 + $0xb8] sm:$0xff] %v1914
        %1955 = vst [vmem:[#allocation2 + $0xc0] sm:$0xff] %v1915
        %1956 = vst [vmem:[#allocation2 + $0xc8] sm:$0xff] %v1916
        %1957 = vst [vmem:[#allocation2 + $0xd0] sm:$0xff] %v1917
        %1958 = vst [vmem:[#allocation2 + $0xd8] sm:$0xff] %v1918
        %1959 = vst [vmem:[#allocation2 + $0xe0] sm:$0xff] %v1919
        %1960 = vst [vmem:[#allocation2 + $0xe8] sm:$0xff] %v1920
        %1961 = vst [vmem:[#allocation2 + $0xf0] sm:$0xff] %v1921
        %1962 = vst [vmem:[#allocation2 + $0xf8] sm:$0xff] %v1922
        %1963 = vst [vmem:[#allocation2 + $0x100] sm:$0xff] %v1923
        %1964 = vst [vmem:[#allocation2 + $0x108] sm:$0xff] %v1924
        %1965 = vst [vmem:[#allocation2 + $0x110] sm:$0xff] %v1925
        %1966 = vst [vmem:[#allocation2 + $0x118] sm:$0xff] %v1926
        %1967 = vst [vmem:[#allocation2 + $0x120] sm:$0xff] %v1927
        %1968 = vst [vmem:[#allocation2 + $0x128] sm:$0xff] %v1928
        %1969 = vst [vmem:[#allocation2 + $0x130] sm:$0xff] %v1929
        %1970 = vst [vmem:[#allocation2 + $0x138] sm:$0xff] %v1930
      $region40: #{preprocessing_forward.1} parent=27 // pred_fallthru
        _
      %p1971 = pnand %p231, %p146
      %p1972 = pneg %p1971
      // Predicated region
      $region41: #{preprocessing_forward.1} parent=27 // pred_check
        _
      $region42: #{preprocessing_forward.1} parent=27 // pred_check_branch
        %1974 = sbr.rel (%p1971) target = $region44
      $region43: #{preprocessing_forward.1} parent=27 // pred_region
        %v1975 = vld [vmem:[#allocation5] sm:$0x1]
        %v1976 = vld [vmem:[#allocation3] sm:$0x1]
        %v1977 = vsub.f32 %v1976, 1.0
        %v1978 = vrcp.pop %v1977
        %v1979 = vmul.f32 %v1975, %v1978
        %v1980 = vrsqrt.pop %v1979
        %v1981 = vmul.f32 %v1979, %v1980
        %vm1982 = vcmp.eq.f32.partialorder %v1979, inf
        %v1983 = vsel %vm1982, %v1979, %v1981
        %vm1984 = vcmp.eq.f32.partialorder %v1979, 0.0
        %v1985 = vand.u32 %v1979, 2147483648
        %v1986 = vsel %vm1984, %v1985, %v1983
        %v1987 = vld [vmem:[#allocation2] sm:$0xff]
        %v1988 = vld [vmem:[#allocation2 + $0x8] sm:$0xff]
        %v1989 = vld [vmem:[#allocation2 + $0x10] sm:$0xff]
        %v1990 = vld [vmem:[#allocation2 + $0x18] sm:$0xff]
        %v1991 = vld [vmem:[#allocation2 + $0x20] sm:$0xff]
        %v1992 = vld [vmem:[#allocation2 + $0x28] sm:$0xff]
        %v1993 = vld [vmem:[#allocation2 + $0x30] sm:$0xff]
        %v1994 = vld [vmem:[#allocation2 + $0x38] sm:$0xff]
        %v1995 = vld [vmem:[#allocation2 + $0x40] sm:$0xff]
        %v1996 = vld [vmem:[#allocation2 + $0x48] sm:$0xff]
        %v1997 = vld [vmem:[#allocation2 + $0x50] sm:$0xff]
        %v1998 = vld [vmem:[#allocation2 + $0x58] sm:$0xff]
        %v1999 = vld [vmem:[#allocation2 + $0x60] sm:$0xff]
        %v2000 = vld [vmem:[#allocation2 + $0x68] sm:$0xff]
        %v2001 = vld [vmem:[#allocation2 + $0x70] sm:$0xff]
        %v2002 = vld [vmem:[#allocation2 + $0x78] sm:$0xff]
        %v2003 = vld [vmem:[#allocation2 + $0x80] sm:$0xff]
        %v2004 = vld [vmem:[#allocation2 + $0x88] sm:$0xff]
        %v2005 = vld [vmem:[#allocation2 + $0x90] sm:$0xff]
        %v2006 = vld [vmem:[#allocation2 + $0x98] sm:$0xff]
        %v2007 = vld [vmem:[#allocation2 + $0xa0] sm:$0xff]
        %v2008 = vld [vmem:[#allocation2 + $0xa8] sm:$0xff]
        %v2009 = vld [vmem:[#allocation2 + $0xb0] sm:$0xff]
        %v2010 = vld [vmem:[#allocation2 + $0xb8] sm:$0xff]
        %v2011 = vld [vmem:[#allocation2 + $0xc0] sm:$0xff]
        %v2012 = vld [vmem:[#allocation2 + $0xc8] sm:$0xff]
        %v2013 = vld [vmem:[#allocation2 + $0xd0] sm:$0xff]
        %v2014 = vld [vmem:[#allocation2 + $0xd8] sm:$0xff]
        %v2015 = vld [vmem:[#allocation2 + $0xe0] sm:$0xff]
        %v2016 = vld [vmem:[#allocation2 + $0xe8] sm:$0xff]
        %v2017 = vld [vmem:[#allocation2 + $0xf0] sm:$0xff]
        %v2018 = vld [vmem:[#allocation2 + $0xf8] sm:$0xff]
        %v2019 = vld [vmem:[#allocation2 + $0x100] sm:$0xff]
        %v2020 = vld [vmem:[#allocation2 + $0x108] sm:$0xff]
        %v2021 = vld [vmem:[#allocation2 + $0x110] sm:$0xff]
        %v2022 = vld [vmem:[#allocation2 + $0x118] sm:$0xff]
        %v2023 = vld [vmem:[#allocation2 + $0x120] sm:$0xff]
        %v2024 = vld [vmem:[#allocation2 + $0x128] sm:$0xff]
        %v2025 = vld [vmem:[#allocation2 + $0x130] sm:$0xff]
        %v2026 = vld [vmem:[#allocation2 + $0x138] sm:$0xff]
        %v2027 = vadd.f32 %v1986, 1e-06
        %v2028 = vrcp.pop %v2027
        %v2029 = vmul.f32 1.0, %v2028
        %v2031 = vlaneseq
        %v2032 = vshrl.u32 %v2031, 7
        %v2033 = vsub.s32 0, %v2032
        %v2034 = vrot.slane %v2029, %v2033
        %2035 = vset.pattern.permute.xlu0 0
        %2036 = vperm.xlu0 %2035, %v2034
        %v2037 = vpop.permute.xlu0 %2036
        %v2039 = vmul.f32 %v1987, %v2037
        %v2040 = vmul.f32 %v1988, %v2037
        %v2041 = vmul.f32 %v1989, %v2037
        %v2042 = vmul.f32 %v1990, %v2037
        %v2043 = vmul.f32 %v1991, %v2037
        %v2044 = vmul.f32 %v1992, %v2037
        %v2045 = vmul.f32 %v1993, %v2037
        %v2046 = vmul.f32 %v1994, %v2037
        %v2047 = vmul.f32 %v1995, %v2037
        %v2048 = vmul.f32 %v1996, %v2037
        %v2049 = vmul.f32 %v1997, %v2037
        %v2050 = vmul.f32 %v1998, %v2037
        %v2051 = vmul.f32 %v1999, %v2037
        %v2052 = vmul.f32 %v2000, %v2037
        %v2053 = vmul.f32 %v2001, %v2037
        %v2054 = vmul.f32 %v2002, %v2037
        %v2055 = vmul.f32 %v2003, %v2037
        %v2056 = vmul.f32 %v2004, %v2037
        %v2057 = vmul.f32 %v2005, %v2037
        %v2058 = vmul.f32 %v2006, %v2037
        %v2059 = vmul.f32 %v2007, %v2037
        %v2060 = vmul.f32 %v2008, %v2037
        %v2061 = vmul.f32 %v2009, %v2037
        %v2062 = vmul.f32 %v2010, %v2037
        %v2063 = vmul.f32 %v2011, %v2037
        %v2064 = vmul.f32 %v2012, %v2037
        %v2065 = vmul.f32 %v2013, %v2037
        %v2066 = vmul.f32 %v2014, %v2037
        %v2067 = vmul.f32 %v2015, %v2037
        %v2068 = vmul.f32 %v2016, %v2037
        %v2069 = vmul.f32 %v2017, %v2037
        %v2070 = vmul.f32 %v2018, %v2037
        %v2071 = vmul.f32 %v2019, %v2037
        %v2072 = vmul.f32 %v2020, %v2037
        %v2073 = vmul.f32 %v2021, %v2037
        %v2074 = vmul.f32 %v2022, %v2037
        %v2075 = vmul.f32 %v2023, %v2037
        %v2076 = vmul.f32 %v2024, %v2037
        %v2077 = vmul.f32 %v2025, %v2037
        %v2078 = vmul.f32 %v2026, %v2037
        %2079 = vst [vmem:[%s2] sm:$0xff] %v2039
        %2080 = vst [vmem:[%s2 + $0x8] sm:$0xff] %v2040
        %2081 = vst [vmem:[%s2 + $0x10] sm:$0xff] %v2041
        %2082 = vst [vmem:[%s2 + $0x18] sm:$0xff] %v2042
        %2083 = vst [vmem:[%s2 + $0x20] sm:$0xff] %v2043
        %2084 = vst [vmem:[%s2 + $0x28] sm:$0xff] %v2044
        %2085 = vst [vmem:[%s2 + $0x30] sm:$0xff] %v2045
        %2086 = vst [vmem:[%s2 + $0x38] sm:$0xff] %v2046
        %2087 = vst [vmem:[%s2 + $0x40] sm:$0xff] %v2047
        %2088 = vst [vmem:[%s2 + $0x48] sm:$0xff] %v2048
        %2089 = vst [vmem:[%s2 + $0x50] sm:$0xff] %v2049
        %2090 = vst [vmem:[%s2 + $0x58] sm:$0xff] %v2050
        %2091 = vst [vmem:[%s2 + $0x60] sm:$0xff] %v2051
        %2092 = vst [vmem:[%s2 + $0x68] sm:$0xff] %v2052
        %2093 = vst [vmem:[%s2 + $0x70] sm:$0xff] %v2053
        %2094 = vst [vmem:[%s2 + $0x78] sm:$0xff] %v2054
        %2095 = vst [vmem:[%s2 + $0x80] sm:$0xff] %v2055
        %2096 = vst [vmem:[%s2 + $0x88] sm:$0xff] %v2056
        %2097 = vst [vmem:[%s2 + $0x90] sm:$0xff] %v2057
        %2098 = vst [vmem:[%s2 + $0x98] sm:$0xff] %v2058
        %2099 = vst [vmem:[%s2 + $0xa0] sm:$0xff] %v2059
        %2100 = vst [vmem:[%s2 + $0xa8] sm:$0xff] %v2060
        %2101 = vst [vmem:[%s2 + $0xb0] sm:$0xff] %v2061
        %2102 = vst [vmem:[%s2 + $0xb8] sm:$0xff] %v2062
        %2103 = vst [vmem:[%s2 + $0xc0] sm:$0xff] %v2063
        %2104 = vst [vmem:[%s2 + $0xc8] sm:$0xff] %v2064
        %2105 = vst [vmem:[%s2 + $0xd0] sm:$0xff] %v2065
        %2106 = vst [vmem:[%s2 + $0xd8] sm:$0xff] %v2066
        %2107 = vst [vmem:[%s2 + $0xe0] sm:$0xff] %v2067
        %2108 = vst [vmem:[%s2 + $0xe8] sm:$0xff] %v2068
        %2109 = vst [vmem:[%s2 + $0xf0] sm:$0xff] %v2069
        %2110 = vst [vmem:[%s2 + $0xf8] sm:$0xff] %v2070
        %2111 = vst [vmem:[%s2 + $0x100] sm:$0xff] %v2071
        %2112 = vst [vmem:[%s2 + $0x108] sm:$0xff] %v2072
        %2113 = vst [vmem:[%s2 + $0x110] sm:$0xff] %v2073
        %2114 = vst [vmem:[%s2 + $0x118] sm:$0xff] %v2074
        %2115 = vst [vmem:[%s2 + $0x120] sm:$0xff] %v2075
        %2116 = vst [vmem:[%s2 + $0x128] sm:$0xff] %v2076
        %2117 = vst [vmem:[%s2 + $0x130] sm:$0xff] %v2077
        %2118 = vst [vmem:[%s2 + $0x138] sm:$0xff] %v2078
      $region44: #{preprocessing_forward.1} parent=27 // pred_fallthru
        _
      // Predicated region
      $region45: #{preprocessing_forward.1} parent=27 // pred_check
        %p2119 = pneg %p85
      $region46: #{preprocessing_forward.1} parent=27 // pred_check_branch
        %2121 = sbr.rel (%p2119) target = $region48
      $region47: #{preprocessing_forward.1} parent=27 // pred_region
        _
      $region48: #{preprocessing_forward.1} parent=27 // pred_fallthru
        _
      // Predicated region
      $region49: #{preprocessing_forward.1} parent=27 // pred_check
        %p2122 = pneg %p85
      $region50: #{preprocessing_forward.1} parent=27 // pred_check_branch
        %2124 = sbr.rel (%p2122) target = $region52
      $region51: #{preprocessing_forward.1} parent=27 // pred_region
        _
      $region52: #{preprocessing_forward.1} parent=27 // pred_fallthru
        _
    $region28: #{preprocessing_forward.1} parent=5 // pred_fallthru
      _
    %p2125 = scmp.le.s32.totalorder 2, %s8
    // Predicated region
    $region53: #{preprocessing_forward.1} parent=5 // pred_check
      %p2126 = pneg %p2125
    $region54: #{preprocessing_forward.1} parent=5 // pred_check_branch
      %2128 = sbr.rel (%p2126) target = $region56
    $region55: #{preprocessing_forward.1} parent=5 // pred_region
      %s2129 = ssub.s32 %s8, 2
    $region56: #{preprocessing_forward.1} parent=5 // pred_fallthru
      _
  $region6: #{preprocessing_forward.1} parent=0 // loop_footer
    %s12 = sadd.s32 1, %s8
  $region7: #{preprocessing_forward.1} parent=0 // loop_footer_branch
    %7 = sbr.rel target = $region3
  $region8: #{preprocessing_forward.1} parent=0 // loop_exit
    _

</llo_original>
